<compile_context>
chip_gen: v5e
topology: v5e:2x2
jax: 0.10.0
libtpu: 0.0.40
codegen_flags: <defaults>
</compile_context>

<pallas_src>
from functools import partial

import jax
import jax.numpy as jnp
from jax import lax
from jax.experimental import pallas as pl
from jax.experimental.pallas import tpu as pltpu


# ----------------------------- Pallas kernel --------------------------------

def bigru_l2norm_kernel(len_ref, gif_ref, gib_ref,
                        whh_f_ref, whh_b_ref, bhn_f_ref, bhn_b_ref,
                        out_ref, resb_scr):
    """Fused bidirectional GRU recurrence + (fwd+bwd)/2 + l2norm.

    gif_ref / gib_ref : (S, B, 3H) precomputed input projections (time-major),
                        with b_ih and b_hr/b_hz already folded in.
    out_ref           : (S, B, H) final averaged + l2-normalized output.
    resb_scr          : (S, B, H) VMEM scratch for the backward direction.
    """
    S, B, _ = gif_ref.shape
    H = whh_f_ref.shape[0]

    lengths = len_ref[...]                                   # (B, 1) int32
    whh_f = whh_f_ref[...]                                   # (H, 3H)
    whh_b = whh_b_ref[...]                                   # (H, 3H)
    # Hoist bias broadcasts out of the loop (JAX does not CSE broadcast_in_dim).
    bhn_f = jnp.broadcast_to(bhn_f_ref[...], (B, H))
    bhn_b = jnp.broadcast_to(bhn_b_ref[...], (B, H))

    def gru_step(gi, h, whh, bhn):
        # gi already contains x@Wih^T + b_ih (+ b_hr/b_hz for the r/z gates).
        gh = jnp.dot(h, whh, preferred_element_type=jnp.float32)   # (B, 3H)
        r = jax.nn.sigmoid(gi[:, 0 * H:1 * H] + gh[:, 0 * H:1 * H])
        z = jax.nn.sigmoid(gi[:, 1 * H:2 * H] + gh[:, 1 * H:2 * H])
        n = jnp.tanh(gi[:, 2 * H:3 * H] + r * (gh[:, 2 * H:3 * H] + bhn))
        return (1.0 - z) * n + z * h

    def body(i, carry):
        h_f, h_b = carry
        # ---- forward direction at t = i ----
        t_f = i
        hf_new = gru_step(gif_ref[t_f], h_f, whh_f, bhn_f)
        valid_f = lengths > t_f                               # (B, 1) bool
        h_f = jnp.where(valid_f, hf_new, h_f)
        out_ref[t_f] = jnp.where(valid_f, h_f, 0.0)           # padded -> 0
        # ---- backward direction at t = S-1-i ----
        t_b = S - 1 - i
        hb_new = gru_step(gib_ref[t_b], h_b, whh_b, bhn_b)
        valid_b = lengths > t_b
        h_b = jnp.where(valid_b, hb_new, h_b)
        resb_scr[t_b] = jnp.where(valid_b, h_b, 0.0)
        return (h_f, h_b)

    h0 = jnp.zeros((B, H), jnp.float32)
    lax.fori_loop(0, S, body, (h0, h0), unroll=True)

    # ----- average fwd/bwd halves, then l2norm along hidden dim (EUP rsqrt) --
    cap = 0.5 * (out_ref[...] + resb_scr[...])                # (S, B, H)
    sumsq = jnp.sum(cap * cap, axis=-1, keepdims=True)
    out_ref[...] = cap * lax.rsqrt(sumsq + 1e-16)             # padded rows stay 0


def bigru_pallas(gi_f, gi_b, lengths, params):
    """gi_f/gi_b: (S, B, 3H) f32 time-major, lengths: (B,) int32 -> (S, B, H)."""
    S, B, G = gi_f.shape
    H = G // 3
    len2d = lengths.astype(jnp.int32).reshape(B, 1)

    vmem = pl.BlockSpec(memory_space=pltpu.MemorySpace.VMEM)
    return pl.pallas_call(
        bigru_l2norm_kernel,
        out_shape=jax.ShapeDtypeStruct((S, B, H), jnp.float32),
        in_specs=[vmem] * 7,
        out_specs=vmem,
        scratch_shapes=[pltpu.VMEM((S, B, H), jnp.float32)],
    )(len2d, gi_f, gi_b,
      params["whh_f"], params["whh_b"], params["bhn_f"], params["bhn_b"])


# ----------------------------- parameter setup ------------------------------

def init_params(key, vocab_size, embed_dim, latent_size):
    """Deterministic synthetic weights, pre-laid-out for the kernel."""
    E = 2 * embed_dim            # glove_dim + rand_dim (add_rand_embed=True)
    H = latent_size
    k = 1.0 / jnp.sqrt(jnp.float32(H))
    keys = jax.random.split(key, 10)

    def u(kk, shape):
        return jax.random.uniform(kk, shape, jnp.float32, -k, k)

    glove_w = jax.random.normal(keys[0], (vocab_size, embed_dim), jnp.float32)
    rand_w = jax.random.normal(keys[1], (vocab_size, embed_dim), jnp.float32)

    wih_f = u(keys[2], (3 * H, E)); whh_f = u(keys[3], (3 * H, H))
    bih_f = u(keys[4], (3 * H,));   bhh_f = u(keys[5], (3 * H,))
    wih_b = u(keys[6], (3 * H, E)); whh_b = u(keys[7], (3 * H, H))
    bih_b = u(keys[8], (3 * H,));   bhh_b = u(keys[9], (3 * H,))

    def fold_bias(b_ih, b_hh):
        # b_ih fully + b_hh for the r,z gates; b_hn must stay inside r*(...).
        return (b_ih + jnp.concatenate(
            [b_hh[:2 * H], jnp.zeros((H,), jnp.float32)])).reshape(1, 3 * H)

    return {
        # fused embedding table: [glove | rand] -> single gather
        "emb_w": jnp.concatenate([glove_w, rand_w], axis=1),        # (V, E)
        # hoisted input projection for both directions: x @ w_in + b_in
        "w_in": jnp.concatenate([wih_f.T, wih_b.T], axis=1),        # (E, 6H)
        "b_in": jnp.concatenate([fold_bias(bih_f, bhh_f),
                                 fold_bias(bih_b, bhh_b)], axis=1), # (1, 6H)
        # recurrent weights (pre-transposed for h @ W) and remaining n-gate bias
        "whh_f": whh_f.T,                                           # (H, 3H)
        "whh_b": whh_b.T,
        "bhn_f": bhh_f[2 * H:].reshape(1, H),
        "bhn_b": bhh_b[2 * H:].reshape(1, H),
    }


# ----------------------------- forward (wrapper) ----------------------------

@partial(jax.jit, static_argnames=("max_len",))
def glove_rnn_encoder_forward(captions, lengths, params, max_len):
    """captions: (B, S) int32, lengths: (B,) int32 (sorted descending).

    Returns (cap_emb, cap_len) matching GloveRNNEncoder.forward:
      cap_emb: (B, max_len, latent_size) f32 (fwd/bwd averaged, l2-normed)
      cap_len: lengths
    """
    H = params["whh_f"].shape[0]
    # Single fused-table gather, then one big MXU matmul for the whole input
    # projection of both directions (hoisted out of the recurrence).
    emb = jnp.take(params["emb_w"], captions, axis=0)        # (B, S, E)
    gi = jnp.einsum("bse,eg->bsg", emb, params["w_in"]) + params["b_in"]  # (B,S,6H)
    gi = jnp.transpose(gi, (1, 0, 2))                        # (S, B, 6H) time-major
    gi_f = gi[:, :, :3 * H]
    gi_b = gi[:, :, 3 * H:]

    out_sbh = bigru_pallas(gi_f, gi_b, lengths, params)      # (S, B, H)
    cap_emb = jnp.transpose(out_sbh, (1, 0, 2))[:, :max_len, :]  # (B, max_len, H)
    return cap_emb, lengths


# --------------------------------- main --------------------------------------

if __name__ == "__main__":
    vocab_size = 50
    embed_dim = 32      # glove_dim == rand_dim
    latent_size = 32
    B, S = 2, 8

    key = jax.random.PRNGKey(0)
    k_param, k_tok = jax.random.split(key)

    params = init_params(k_param, vocab_size, embed_dim, latent_size)
    captions = jax.random.randint(k_tok, (B, S), 0, vocab_size, dtype=jnp.int32)
    lens_list = [8, 5]                                       # sorted descending (packing)
    lengths = jnp.array(lens_list, dtype=jnp.int32)
    max_len = max(lens_list)                                 # static -> no host sync

    cap_emb, cap_len = glove_rnn_encoder_forward(captions, lengths, params, max_len)
    cap_emb = jax.block_until_ready(cap_emb)

    assert cap_emb.shape == (B, max_len, latent_size)
    assert bool(jnp.all(jnp.isfinite(cap_emb)))
    print("KERNEL_OK")
</pallas_src>

<mosaic_0001>
module attributes {stable_mosaic.version = 11 : i64} {
  func.func @bigru_l2norm_kernel(%arg0: memref<2x1xi32, #tpu.memory_space<vmem>>, %arg1: memref<8x2x96xf32, #tpu.memory_space<vmem>>, %arg2: memref<8x2x96xf32, #tpu.memory_space<vmem>>, %arg3: memref<32x96xf32, #tpu.memory_space<vmem>>, %arg4: memref<32x96xf32, #tpu.memory_space<vmem>>, %arg5: memref<1x32xf32, #tpu.memory_space<vmem>>, %arg6: memref<1x32xf32, #tpu.memory_space<vmem>>, %arg7: memref<8x2x32xf32, #tpu.memory_space<vmem>>, %arg8: memref<8x2x32xf32, #tpu.memory_space<vmem>>) attributes {dimension_semantics = [], scalar_prefetch = 0 : i64, scratch_operands = 1 : i64, tpu.core_type = #tpu.core_type<tc>} {
    %c0 = arith.constant 0 : index
    %c0_0 = arith.constant 0 : index
    %0 = vector.load %arg0[%c0, %c0_0] : memref<2x1xi32, #tpu.memory_space<vmem>>, vector<2x1xi32>
    %c0_1 = arith.constant 0 : index
    %c0_2 = arith.constant 0 : index
    %1 = vector.load %arg3[%c0_1, %c0_2] : memref<32x96xf32, #tpu.memory_space<vmem>>, vector<32x96xf32>
    %c0_3 = arith.constant 0 : index
    %c0_4 = arith.constant 0 : index
    %2 = vector.load %arg4[%c0_3, %c0_4] : memref<32x96xf32, #tpu.memory_space<vmem>>, vector<32x96xf32>
    %c0_5 = arith.constant 0 : index
    %c0_6 = arith.constant 0 : index
    %3 = vector.load %arg5[%c0_5, %c0_6] : memref<1x32xf32, #tpu.memory_space<vmem>>, vector<1x32xf32>
    %4 = vector.shape_cast %3 : vector<1x32xf32> to vector<1x32xf32>
    %5 = vector.broadcast %4 : vector<1x32xf32> to vector<2x32xf32>
    %c0_7 = arith.constant 0 : index
    %c0_8 = arith.constant 0 : index
    %6 = vector.load %arg6[%c0_7, %c0_8] : memref<1x32xf32, #tpu.memory_space<vmem>>, vector<1x32xf32>
    %7 = vector.shape_cast %6 : vector<1x32xf32> to vector<1x32xf32>
    %8 = vector.broadcast %7 : vector<1x32xf32> to vector<2x32xf32>
    %cst = arith.constant 0.000000e+00 : f32
    %9 = vector.broadcast %cst : f32 to vector<2x32xf32>
    %c0_i32 = arith.constant 0 : i32
    %10 = arith.index_cast %c0_i32 : i32 to index
    %c0_9 = arith.constant 0 : index
    %c0_10 = arith.constant 0 : index
    %11 = vector.load %arg1[%10, %c0_9, %c0_10] : memref<8x2x96xf32, #tpu.memory_space<vmem>>, vector<1x2x96xf32>
    %12 = vector.shape_cast %11 : vector<1x2x96xf32> to vector<2x96xf32>
    %cst_11 = arith.constant dense<0.000000e+00> : vector<2x96xf32>
    %13 = tpu.matmul %9, %1, %cst_11 {dimension_numbers = #tpu.dot_dimension_numbers<[1], [0], [0], [1], [0, 0, 1, 1], [], []>} : vector<2x32xf32>, vector<32x96xf32>, vector<2x96xf32> -> vector<2x96xf32>
    %14 = vector.extract_strided_slice %12 {offsets = [0, 0], sizes = [2, 32], strides = [1, 1]} : vector<2x96xf32> to vector<2x32xf32>
    %15 = vector.extract_strided_slice %13 {offsets = [0, 0], sizes = [2, 32], strides = [1, 1]} : vector<2x96xf32> to vector<2x32xf32>
    %16 = arith.addf %14, %15 : vector<2x32xf32>
    %17 = arith.negf %16 : vector<2x32xf32>
    %18 = math.exp %17 : vector<2x32xf32>
    %cst_12 = arith.constant 1.000000e+00 : f32
    %19 = vector.broadcast %cst_12 : f32 to vector<2x32xf32>
    %20 = arith.addf %19, %18 : vector<2x32xf32>
    %21 = arith.divf %19, %20 : vector<2x32xf32>
    %22 = vector.extract_strided_slice %12 {offsets = [0, 32], sizes = [2, 32], strides = [1, 1]} : vector<2x96xf32> to vector<2x32xf32>
    %23 = vector.extract_strided_slice %13 {offsets = [0, 32], sizes = [2, 32], strides = [1, 1]} : vector<2x96xf32> to vector<2x32xf32>
    %24 = arith.addf %22, %23 : vector<2x32xf32>
    %25 = arith.negf %24 : vector<2x32xf32>
    %26 = math.exp %25 : vector<2x32xf32>
    %cst_13 = arith.constant 1.000000e+00 : f32
    %27 = vector.broadcast %cst_13 : f32 to vector<2x32xf32>
    %28 = arith.addf %27, %26 : vector<2x32xf32>
    %29 = arith.divf %27, %28 : vector<2x32xf32>
    %30 = vector.extract_strided_slice %12 {offsets = [0, 64], sizes = [2, 32], strides = [1, 1]} : vector<2x96xf32> to vector<2x32xf32>
    %31 = vector.extract_strided_slice %13 {offsets = [0, 64], sizes = [2, 32], strides = [1, 1]} : vector<2x96xf32> to vector<2x32xf32>
    %32 = arith.addf %31, %5 : vector<2x32xf32>
    %33 = arith.mulf %21, %32 : vector<2x32xf32>
    %34 = arith.addf %30, %33 : vector<2x32xf32>
    %35 = math.tanh %34 : vector<2x32xf32>
    %cst_14 = arith.constant 1.000000e+00 : f32
    %36 = vector.broadcast %cst_14 : f32 to vector<2x32xf32>
    %37 = arith.subf %36, %29 : vector<2x32xf32>
    %38 = arith.mulf %37, %35 : vector<2x32xf32>
    %39 = arith.mulf %29, %9 : vector<2x32xf32>
    %40 = arith.addf %38, %39 : vector<2x32xf32>
    %41 = vector.broadcast %c0_i32 : i32 to vector<2x1xi32>
    %42 = arith.cmpi sgt, %0, %41 : vector<2x1xi32>
    %43 = vector.shape_cast %42 : vector<2x1xi1> to vector<2x1xi1>
    %44 = vector.broadcast %43 : vector<2x1xi1> to vector<2x32xi1>
    %45 = arith.select %44, %40, %9 : vector<2x32xi1>, vector<2x32xf32>
    %cst_15 = arith.constant 0.000000e+00 : f32
    %46 = vector.shape_cast %42 : vector<2x1xi1> to vector<2x1xi1>
    %47 = vector.broadcast %46 : vector<2x1xi1> to vector<2x32xi1>
    %48 = vector.broadcast %cst_15 : f32 to vector<2x32xf32>
    %49 = arith.select %47, %45, %48 : vector<2x32xi1>, vector<2x32xf32>
    %50 = arith.index_cast %c0_i32 : i32 to index
    %c0_16 = arith.constant 0 : index
    %c0_17 = arith.constant 0 : index
    %51 = vector.load %arg7[%50, %c0_16, %c0_17] : memref<8x2x32xf32, #tpu.memory_space<vmem>>, vector<1x2x32xf32>
    %52 = vector.shape_cast %51 : vector<1x2x32xf32> to vector<2x32xf32>
    %53 = vector.shape_cast %49 : vector<2x32xf32> to vector<1x2x32xf32>
    tpu.vector_store %arg7[%50, %c0_16, %c0_17], %53 {strides = array<i32>} : memref<8x2x32xf32, #tpu.memory_space<vmem>>, vector<1x2x32xf32>,
    %c7_i32 = arith.constant 7 : i32
    %54 = arith.subi %c7_i32, %c0_i32 : i32
    %55 = arith.index_cast %54 : i32 to index
    %c0_18 = arith.constant 0 : index
    %c0_19 = arith.constant 0 : index
    %56 = vector.load %arg2[%55, %c0_18, %c0_19] : memref<8x2x96xf32, #tpu.memory_space<vmem>>, vector<1x2x96xf32>
    %57 = vector.shape_cast %56 : vector<1x2x96xf32> to vector<2x96xf32>
    %cst_20 = arith.constant dense<0.000000e+00> : vector<2x96xf32>
    %58 = tpu.matmul %9, %2, %cst_20 {dimension_numbers = #tpu.dot_dimension_numbers<[1], [0], [0], [1], [0, 0, 1, 1], [], []>} : vector<2x32xf32>, vector<32x96xf32>, vector<2x96xf32> -> vector<2x96xf32>
    %59 = vector.extract_strided_slice %57 {offsets = [0, 0], sizes = [2, 32], strides = [1, 1]} : vector<2x96xf32> to vector<2x32xf32>
    %60 = vector.extract_strided_slice %58 {offsets = [0, 0], sizes = [2, 32], strides = [1, 1]} : vector<2x96xf32> to vector<2x32xf32>
    %61 = arith.addf %59, %60 : vector<2x32xf32>
    %62 = arith.negf %61 : vector<2x32xf32>
    %63 = math.exp %62 : vector<2x32xf32>
    %cst_21 = arith.constant 1.000000e+00 : f32
    %64 = vector.broadcast %cst_21 : f32 to vector<2x32xf32>
    %65 = arith.addf %64, %63 : vector<2x32xf32>
    %66 = arith.divf %64, %65 : vector<2x32xf32>
    %67 = vector.extract_strided_slice %57 {offsets = [0, 32], sizes = [2, 32], strides = [1, 1]} : vector<2x96xf32> to vector<2x32xf32>
    %68 = vector.extract_strided_slice %58 {offsets = [0, 32], sizes = [2, 32], strides = [1, 1]} : vector<2x96xf32> to vector<2x32xf32>
    %69 = arith.addf %67, %68 : vector<2x32xf32>
    %70 = arith.negf %69 : vector<2x32xf32>
    %71 = math.exp %70 : vector<2x32xf32>
    %cst_22 = arith.constant 1.000000e+00 : f32
    %72 = vector.broadcast %cst_22 : f32 to vector<2x32xf32>
    %73 = arith.addf %72, %71 : vector<2x32xf32>
    %74 = arith.divf %72, %73 : vector<2x32xf32>
    %75 = vector.extract_strided_slice %57 {offsets = [0, 64], sizes = [2, 32], strides = [1, 1]} : vector<2x96xf32> to vector<2x32xf32>
    %76 = vector.extract_strided_slice %58 {offsets = [0, 64], sizes = [2, 32], strides = [1, 1]} : vector<2x96xf32> to vector<2x32xf32>
    %77 = arith.addf %76, %8 : vector<2x32xf32>
    %78 = arith.mulf %66, %77 : vector<2x32xf32>
    %79 = arith.addf %75, %78 : vector<2x32xf32>
    %80 = math.tanh %79 : vector<2x32xf32>
    %cst_23 = arith.constant 1.000000e+00 : f32
    %81 = vector.broadcast %cst_23 : f32 to vector<2x32xf32>
    %82 = arith.subf %81, %74 : vector<2x32xf32>
    %83 = arith.mulf %82, %80 : vector<2x32xf32>
    %84 = arith.mulf %74, %9 : vector<2x32xf32>
    %85 = arith.addf %83, %84 : vector<2x32xf32>
    %86 = vector.broadcast %54 : i32 to vector<2x1xi32>
    %87 = arith.cmpi sgt, %0, %86 : vector<2x1xi32>
    %88 = vector.shape_cast %87 : vector<2x1xi1> to vector<2x1xi1>
    %89 = vector.broadcast %88 : vector<2x1xi1> to vector<2x32xi1>
    %90 = arith.select %89, %85, %9 : vector<2x32xi1>, vector<2x32xf32>
    %cst_24 = arith.constant 0.000000e+00 : f32
    %91 = vector.shape_cast %87 : vector<2x1xi1> to vector<2x1xi1>
    %92 = vector.broadcast %91 : vector<2x1xi1> to vector<2x32xi1>
    %93 = vector.broadcast %cst_24 : f32 to vector<2x32xf32>
    %94 = arith.select %92, %90, %93 : vector<2x32xi1>, vector<2x32xf32>
    %95 = arith.index_cast %54 : i32 to index
    %c0_25 = arith.constant 0 : index
    %c0_26 = arith.constant 0 : index
    %96 = vector.load %arg8[%95, %c0_25, %c0_26] : memref<8x2x32xf32, #tpu.memory_space<vmem>>, vector<1x2x32xf32>
    %97 = vector.shape_cast %96 : vector<1x2x32xf32> to vector<2x32xf32>
    %98 = vector.shape_cast %94 : vector<2x32xf32> to vector<1x2x32xf32>
    tpu.vector_store %arg8[%95, %c0_25, %c0_26], %98 {strides = array<i32>} : memref<8x2x32xf32, #tpu.memory_space<vmem>>, vector<1x2x32xf32>,
    %c1_i32 = arith.constant 1 : i32
    %99 = arith.index_cast %c1_i32 : i32 to index
    %c0_27 = arith.constant 0 : index
    %c0_28 = arith.constant 0 : index
    %100 = vector.load %arg1[%99, %c0_27, %c0_28] : memref<8x2x96xf32, #tpu.memory_space<vmem>>, vector<1x2x96xf32>
    %101 = vector.shape_cast %100 : vector<1x2x96xf32> to vector<2x96xf32>
    %cst_29 = arith.constant dense<0.000000e+00> : vector<2x96xf32>
    %102 = tpu.matmul %45, %1, %cst_29 {dimension_numbers = #tpu.dot_dimension_numbers<[1], [0], [0], [1], [0, 0, 1, 1], [], []>} : vector<2x32xf32>, vector<32x96xf32>, vector<2x96xf32> -> vector<2x96xf32>
    %103 = vector.extract_strided_slice %101 {offsets = [0, 0], sizes = [2, 32], strides = [1, 1]} : vector<2x96xf32> to vector<2x32xf32>
    %104 = vector.extract_strided_slice %102 {offsets = [0, 0], sizes = [2, 32], strides = [1, 1]} : vector<2x96xf32> to vector<2x32xf32>
    %105 = arith.addf %103, %104 : vector<2x32xf32>
    %106 = arith.negf %105 : vector<2x32xf32>
    %107 = math.exp %106 : vector<2x32xf32>
    %cst_30 = arith.constant 1.000000e+00 : f32
    %108 = vector.broadcast %cst_30 : f32 to vector<2x32xf32>
    %109 = arith.addf %108, %107 : vector<2x32xf32>
    %110 = arith.divf %108, %109 : vector<2x32xf32>
    %111 = vector.extract_strided_slice %101 {offsets = [0, 32], sizes = [2, 32], strides = [1, 1]} : vector<2x96xf32> to vector<2x32xf32>
    %112 = vector.extract_strided_slice %102 {offsets = [0, 32], sizes = [2, 32], strides = [1, 1]} : vector<2x96xf32> to vector<2x32xf32>
    %113 = arith.addf %111, %112 : vector<2x32xf32>
    %114 = arith.negf %113 : vector<2x32xf32>
    %115 = math.exp %114 : vector<2x32xf32>
    %cst_31 = arith.constant 1.000000e+00 : f32
    %116 = vector.broadcast %cst_31 : f32 to vector<2x32xf32>
    %117 = arith.addf %116, %115 : vector<2x32xf32>
    %118 = arith.divf %116, %117 : vector<2x32xf32>
    %119 = vector.extract_strided_slice %101 {offsets = [0, 64], sizes = [2, 32], strides = [1, 1]} : vector<2x96xf32> to vector<2x32xf32>
    %120 = vector.extract_strided_slice %102 {offsets = [0, 64], sizes = [2, 32], strides = [1, 1]} : vector<2x96xf32> to vector<2x32xf32>
    %121 = arith.addf %120, %5 : vector<2x32xf32>
    %122 = arith.mulf %110, %121 : vector<2x32xf32>
    %123 = arith.addf %119, %122 : vector<2x32xf32>
    %124 = math.tanh %123 : vector<2x32xf32>
    %cst_32 = arith.constant 1.000000e+00 : f32
    %125 = vector.broadcast %cst_32 : f32 to vector<2x32xf32>
    %126 = arith.subf %125, %118 : vector<2x32xf32>
    %127 = arith.mulf %126, %124 : vector<2x32xf32>
    %128 = arith.mulf %118, %45 : vector<2x32xf32>
    %129 = arith.addf %127, %128 : vector<2x32xf32>
    %130 = vector.broadcast %c1_i32 : i32 to vector<2x1xi32>
    %131 = arith.cmpi sgt, %0, %130 : vector<2x1xi32>
    %132 = vector.shape_cast %131 : vector<2x1xi1> to vector<2x1xi1>
    %133 = vector.broadcast %132 : vector<2x1xi1> to vector<2x32xi1>
    %134 = arith.select %133, %129, %45 : vector<2x32xi1>, vector<2x32xf32>
    %cst_33 = arith.constant 0.000000e+00 : f32
    %135 = vector.shape_cast %131 : vector<2x1xi1> to vector<2x1xi1>
    %136 = vector.broadcast %135 : vector<2x1xi1> to vector<2x32xi1>
    %137 = vector.broadcast %cst_33 : f32 to vector<2x32xf32>
    %138 = arith.select %136, %134, %137 : vector<2x32xi1>, vector<2x32xf32>
    %139 = arith.index_cast %c1_i32 : i32 to index
    %c0_34 = arith.constant 0 : index
    %c0_35 = arith.constant 0 : index
    %140 = vector.load %arg7[%139, %c0_34, %c0_35] : memref<8x2x32xf32, #tpu.memory_space<vmem>>, vector<1x2x32xf32>
    %141 = vector.shape_cast %140 : vector<1x2x32xf32> to vector<2x32xf32>
    %142 = vector.shape_cast %138 : vector<2x32xf32> to vector<1x2x32xf32>
    tpu.vector_store %arg7[%139, %c0_34, %c0_35], %142 {strides = array<i32>} : memref<8x2x32xf32, #tpu.memory_space<vmem>>, vector<1x2x32xf32>,
    %c7_i32_36 = arith.constant 7 : i32
    %143 = arith.subi %c7_i32_36, %c1_i32 : i32
    %144 = arith.index_cast %143 : i32 to index
    %c0_37 = arith.constant 0 : index
    %c0_38 = arith.constant 0 : index
    %145 = vector.load %arg2[%144, %c0_37, %c0_38] : memref<8x2x96xf32, #tpu.memory_space<vmem>>, vector<1x2x96xf32>
    %146 = vector.shape_cast %145 : vector<1x2x96xf32> to vector<2x96xf32>
    %cst_39 = arith.constant dense<0.000000e+00> : vector<2x96xf32>
    %147 = tpu.matmul %90, %2, %cst_39 {dimension_numbers = #tpu.dot_dimension_numbers<[1], [0], [0], [1], [0, 0, 1, 1], [], []>} : vector<2x32xf32>, vector<32x96xf32>, vector<2x96xf32> -> vector<2x96xf32>
    %148 = vector.extract_strided_slice %146 {offsets = [0, 0], sizes = [2, 32], strides = [1, 1]} : vector<2x96xf32> to vector<2x32xf32>
    %149 = vector.extract_strided_slice %147 {offsets = [0, 0], sizes = [2, 32], strides = [1, 1]} : vector<2x96xf32> to vector<2x32xf32>
    %150 = arith.addf %148, %149 : vector<2x32xf32>
    %151 = arith.negf %150 : vector<2x32xf32>
    %152 = math.exp %151 : vector<2x32xf32>
    %cst_40 = arith.constant 1.000000e+00 : f32
    %153 = vector.broadcast %cst_40 : f32 to vector<2x32xf32>
    %154 = arith.addf %153, %152 : vector<2x32xf32>
    %155 = arith.divf %153, %154 : vector<2x32xf32>
    %156 = vector.extract_strided_slice %146 {offsets = [0, 32], sizes = [2, 32], strides = [1, 1]} : vector<2x96xf32> to vector<2x32xf32>
    %157 = vector.extract_strided_slice %147 {offsets = [0, 32], sizes = [2, 32], strides = [1, 1]} : vector<2x96xf32> to vector<2x32xf32>
    %158 = arith.addf %156, %157 : vector<2x32xf32>
    %159 = arith.negf %158 : vector<2x32xf32>
    %160 = math.exp %159 : vector<2x32xf32>
    %cst_41 = arith.constant 1.000000e+00 : f32
    %161 = vector.broadcast %cst_41 : f32 to vector<2x32xf32>
    %162 = arith.addf %161, %160 : vector<2x32xf32>
    %163 = arith.divf %161, %162 : vector<2x32xf32>
    %164 = vector.extract_strided_slice %146 {offsets = [0, 64], sizes = [2, 32], strides = [1, 1]} : vector<2x96xf32> to vector<2x32xf32>
    %165 = vector.extract_strided_slice %147 {offsets = [0, 64], sizes = [2, 32], strides = [1, 1]} : vector<2x96xf32> to vector<2x32xf32>
    %166 = arith.addf %165, %8 : vector<2x32xf32>
    %167 = arith.mulf %155, %166 : vector<2x32xf32>
    %168 = arith.addf %164, %167 : vector<2x32xf32>
    %169 = math.tanh %168 : vector<2x32xf32>
    %cst_42 = arith.constant 1.000000e+00 : f32
    %170 = vector.broadcast %cst_42 : f32 to vector<2x32xf32>
    %171 = arith.subf %170, %163 : vector<2x32xf32>
    %172 = arith.mulf %171, %169 : vector<2x32xf32>
    %173 = arith.mulf %163, %90 : vector<2x32xf32>
    %174 = arith.addf %172, %173 : vector<2x32xf32>
    %175 = vector.broadcast %143 : i32 to vector<2x1xi32>
    %176 = arith.cmpi sgt, %0, %175 : vector<2x1xi32>
    %177 = vector.shape_cast %176 : vector<2x1xi1> to vector<2x1xi1>
    %178 = vector.broadcast %177 : vector<2x1xi1> to vector<2x32xi1>
    %179 = arith.select %178, %174, %90 : vector<2x32xi1>, vector<2x32xf32>
    %cst_43 = arith.constant 0.000000e+00 : f32
    %180 = vector.shape_cast %176 : vector<2x1xi1> to vector<2x1xi1>
    %181 = vector.broadcast %180 : vector<2x1xi1> to vector<2x32xi1>
    %182 = vector.broadcast %cst_43 : f32 to vector<2x32xf32>
    %183 = arith.select %181, %179, %182 : vector<2x32xi1>, vector<2x32xf32>
    %184 = arith.index_cast %143 : i32 to index
    %c0_44 = arith.constant 0 : index
    %c0_45 = arith.constant 0 : index
    %185 = vector.load %arg8[%184, %c0_44, %c0_45] : memref<8x2x32xf32, #tpu.memory_space<vmem>>, vector<1x2x32xf32>
    %186 = vector.shape_cast %185 : vector<1x2x32xf32> to vector<2x32xf32>
    %187 = vector.shape_cast %183 : vector<2x32xf32> to vector<1x2x32xf32>
    tpu.vector_store %arg8[%184, %c0_44, %c0_45], %187 {strides = array<i32>} : memref<8x2x32xf32, #tpu.memory_space<vmem>>, vector<1x2x32xf32>,
    %c2_i32 = arith.constant 2 : i32
    %188 = arith.index_cast %c2_i32 : i32 to index
    %c0_46 = arith.constant 0 : index
    %c0_47 = arith.constant 0 : index
    %189 = vector.load %arg1[%188, %c0_46, %c0_47] : memref<8x2x96xf32, #tpu.memory_space<vmem>>, vector<1x2x96xf32>
    %190 = vector.shape_cast %189 : vector<1x2x96xf32> to vector<2x96xf32>
    %cst_48 = arith.constant dense<0.000000e+00> : vector<2x96xf32>
    %191 = tpu.matmul %134, %1, %cst_48 {dimension_numbers = #tpu.dot_dimension_numbers<[1], [0], [0], [1], [0, 0, 1, 1], [], []>} : vector<2x32xf32>, vector<32x96xf32>, vector<2x96xf32> -> vector<2x96xf32>
    %192 = vector.extract_strided_slice %190 {offsets = [0, 0], sizes = [2, 32], strides = [1, 1]} : vector<2x96xf32> to vector<2x32xf32>
    %193 = vector.extract_strided_slice %191 {offsets = [0, 0], sizes = [2, 32], strides = [1, 1]} : vector<2x96xf32> to vector<2x32xf32>
    %194 = arith.addf %192, %193 : vector<2x32xf32>
    %195 = arith.negf %194 : vector<2x32xf32>
    %196 = math.exp %195 : vector<2x32xf32>
    %cst_49 = arith.constant 1.000000e+00 : f32
    %197 = vector.broadcast %cst_49 : f32 to vector<2x32xf32>
    %198 = arith.addf %197, %196 : vector<2x32xf32>
    %199 = arith.divf %197, %198 : vector<2x32xf32>
    %200 = vector.extract_strided_slice %190 {offsets = [0, 32], sizes = [2, 32], strides = [1, 1]} : vector<2x96xf32> to vector<2x32xf32>
    %201 = vector.extract_strided_slice %191 {offsets = [0, 32], sizes = [2, 32], strides = [1, 1]} : vector<2x96xf32> to vector<2x32xf32>
    %202 = arith.addf %200, %201 : vector<2x32xf32>
    %203 = arith.negf %202 : vector<2x32xf32>
    %204 = math.exp %203 : vector<2x32xf32>
    %cst_50 = arith.constant 1.000000e+00 : f32
    %205 = vector.broadcast %cst_50 : f32 to vector<2x32xf32>
    %206 = arith.addf %205, %204 : vector<2x32xf32>
    %207 = arith.divf %205, %206 : vector<2x32xf32>
    %208 = vector.extract_strided_slice %190 {offsets = [0, 64], sizes = [2, 32], strides = [1, 1]} : vector<2x96xf32> to vector<2x32xf32>
    %209 = vector.extract_strided_slice %191 {offsets = [0, 64], sizes = [2, 32], strides = [1, 1]} : vector<2x96xf32> to vector<2x32xf32>
    %210 = arith.addf %209, %5 : vector<2x32xf32>
    %211 = arith.mulf %199, %210 : vector<2x32xf32>
    %212 = arith.addf %208, %211 : vector<2x32xf32>
    %213 = math.tanh %212 : vector<2x32xf32>
    %cst_51 = arith.constant 1.000000e+00 : f32
    %214 = vector.broadcast %cst_51 : f32 to vector<2x32xf32>
    %215 = arith.subf %214, %207 : vector<2x32xf32>
    %216 = arith.mulf %215, %213 : vector<2x32xf32>
    %217 = arith.mulf %207, %134 : vector<2x32xf32>
    %218 = arith.addf %216, %217 : vector<2x32xf32>
    %219 = vector.broadcast %c2_i32 : i32 to vector<2x1xi32>
    %220 = arith.cmpi sgt, %0, %219 : vector<2x1xi32>
    %221 = vector.shape_cast %220 : vector<2x1xi1> to vector<2x1xi1>
    %222 = vector.broadcast %221 : vector<2x1xi1> to vector<2x32xi1>
    %223 = arith.select %222, %218, %134 : vector<2x32xi1>, vector<2x32xf32>
    %cst_52 = arith.constant 0.000000e+00 : f32
    %224 = vector.shape_cast %220 : vector<2x1xi1> to vector<2x1xi1>
    %225 = vector.broadcast %224 : vector<2x1xi1> to vector<2x32xi1>
    %226 = vector.broadcast %cst_52 : f32 to vector<2x32xf32>
    %227 = arith.select %225, %223, %226 : vector<2x32xi1>, vector<2x32xf32>
    %228 = arith.index_cast %c2_i32 : i32 to index
    %c0_53 = arith.constant 0 : index
    %c0_54 = arith.constant 0 : index
    %229 = vector.load %arg7[%228, %c0_53, %c0_54] : memref<8x2x32xf32, #tpu.memory_space<vmem>>, vector<1x2x32xf32>
    %230 = vector.shape_cast %229 : vector<1x2x32xf32> to vector<2x32xf32>
    %231 = vector.shape_cast %227 : vector<2x32xf32> to vector<1x2x32xf32>
    tpu.vector_store %arg7[%228, %c0_53, %c0_54], %231 {strides = array<i32>} : memref<8x2x32xf32, #tpu.memory_space<vmem>>, vector<1x2x32xf32>,
    %c7_i32_55 = arith.constant 7 : i32
    %232 = arith.subi %c7_i32_55, %c2_i32 : i32
    %233 = arith.index_cast %232 : i32 to index
    %c0_56 = arith.constant 0 : index
    %c0_57 = arith.constant 0 : index
    %234 = vector.load %arg2[%233, %c0_56, %c0_57] : memref<8x2x96xf32, #tpu.memory_space<vmem>>, vector<1x2x96xf32>
    %235 = vector.shape_cast %234 : vector<1x2x96xf32> to vector<2x96xf32>
    %cst_58 = arith.constant dense<0.000000e+00> : vector<2x96xf32>
    %236 = tpu.matmul %179, %2, %cst_58 {dimension_numbers = #tpu.dot_dimension_numbers<[1], [0], [0], [1], [0, 0, 1, 1], [], []>} : vector<2x32xf32>, vector<32x96xf32>, vector<2x96xf32> -> vector<2x96xf32>
    %237 = vector.extract_strided_slice %235 {offsets = [0, 0], sizes = [2, 32], strides = [1, 1]} : vector<2x96xf32> to vector<2x32xf32>
    %238 = vector.extract_strided_slice %236 {offsets = [0, 0], sizes = [2, 32], strides = [1, 1]} : vector<2x96xf32> to vector<2x32xf32>
    %239 = arith.addf %237, %238 : vector<2x32xf32>
    %240 = arith.negf %239 : vector<2x32xf32>
    %241 = math.exp %240 : vector<2x32xf32>
    %cst_59 = arith.constant 1.000000e+00 : f32
    %242 = vector.broadcast %cst_59 : f32 to vector<2x32xf32>
    %243 = arith.addf %242, %241 : vector<2x32xf32>
    %244 = arith.divf %242, %243 : vector<2x32xf32>
    %245 = vector.extract_strided_slice %235 {offsets = [0, 32], sizes = [2, 32], strides = [1, 1]} : vector<2x96xf32> to vector<2x32xf32>
    %246 = vector.extract_strided_slice %236 {offsets = [0, 32], sizes = [2, 32], strides = [1, 1]} : vector<2x96xf32> to vector<2x32xf32>
    %247 = arith.addf %245, %246 : vector<2x32xf32>
    %248 = arith.negf %247 : vector<2x32xf32>
    %249 = math.exp %248 : vector<2x32xf32>
    %cst_60 = arith.constant 1.000000e+00 : f32
    %250 = vector.broadcast %cst_60 : f32 to vector<2x32xf32>
    %251 = arith.addf %250, %249 : vector<2x32xf32>
    %252 = arith.divf %250, %251 : vector<2x32xf32>
    %253 = vector.extract_strided_slice %235 {offsets = [0, 64], sizes = [2, 32], strides = [1, 1]} : vector<2x96xf32> to vector<2x32xf32>
    %254 = vector.extract_strided_slice %236 {offsets = [0, 64], sizes = [2, 32], strides = [1, 1]} : vector<2x96xf32> to vector<2x32xf32>
    %255 = arith.addf %254, %8 : vector<2x32xf32>
    %256 = arith.mulf %244, %255 : vector<2x32xf32>
    %257 = arith.addf %253, %256 : vector<2x32xf32>
    %258 = math.tanh %257 : vector<2x32xf32>
    %cst_61 = arith.constant 1.000000e+00 : f32
    %259 = vector.broadcast %cst_61 : f32 to vector<2x32xf32>
    %260 = arith.subf %259, %252 : vector<2x32xf32>
    %261 = arith.mulf %260, %258 : vector<2x32xf32>
    %262 = arith.mulf %252, %179 : vector<2x32xf32>
    %263 = arith.addf %261, %262 : vector<2x32xf32>
    %264 = vector.broadcast %232 : i32 to vector<2x1xi32>
    %265 = arith.cmpi sgt, %0, %264 : vector<2x1xi32>
    %266 = vector.shape_cast %265 : vector<2x1xi1> to vector<2x1xi1>
    %267 = vector.broadcast %266 : vector<2x1xi1> to vector<2x32xi1>
    %268 = arith.select %267, %263, %179 : vector<2x32xi1>, vector<2x32xf32>
    %cst_62 = arith.constant 0.000000e+00 : f32
    %269 = vector.shape_cast %265 : vector<2x1xi1> to vector<2x1xi1>
    %270 = vector.broadcast %269 : vector<2x1xi1> to vector<2x32xi1>
    %271 = vector.broadcast %cst_62 : f32 to vector<2x32xf32>
    %272 = arith.select %270, %268, %271 : vector<2x32xi1>, vector<2x32xf32>
    %273 = arith.index_cast %232 : i32 to index
    %c0_63 = arith.constant 0 : index
    %c0_64 = arith.constant 0 : index
    %274 = vector.load %arg8[%273, %c0_63, %c0_64] : memref<8x2x32xf32, #tpu.memory_space<vmem>>, vector<1x2x32xf32>
    %275 = vector.shape_cast %274 : vector<1x2x32xf32> to vector<2x32xf32>
    %276 = vector.shape_cast %272 : vector<2x32xf32> to vector<1x2x32xf32>
    tpu.vector_store %arg8[%273, %c0_63, %c0_64], %276 {strides = array<i32>} : memref<8x2x32xf32, #tpu.memory_space<vmem>>, vector<1x2x32xf32>,
    %c3_i32 = arith.constant 3 : i32
    %277 = arith.index_cast %c3_i32 : i32 to index
    %c0_65 = arith.constant 0 : index
    %c0_66 = arith.constant 0 : index
    %278 = vector.load %arg1[%277, %c0_65, %c0_66] : memref<8x2x96xf32, #tpu.memory_space<vmem>>, vector<1x2x96xf32>
    %279 = vector.shape_cast %278 : vector<1x2x96xf32> to vector<2x96xf32>
    %cst_67 = arith.constant dense<0.000000e+00> : vector<2x96xf32>
    %280 = tpu.matmul %223, %1, %cst_67 {dimension_numbers = #tpu.dot_dimension_numbers<[1], [0], [0], [1], [0, 0, 1, 1], [], []>} : vector<2x32xf32>, vector<32x96xf32>, vector<2x96xf32> -> vector<2x96xf32>
    %281 = vector.extract_strided_slice %279 {offsets = [0, 0], sizes = [2, 32], strides = [1, 1]} : vector<2x96xf32> to vector<2x32xf32>
    %282 = vector.extract_strided_slice %280 {offsets = [0, 0], sizes = [2, 32], strides = [1, 1]} : vector<2x96xf32> to vector<2x32xf32>
    %283 = arith.addf %281, %282 : vector<2x32xf32>
    %284 = arith.negf %283 : vector<2x32xf32>
    %285 = math.exp %284 : vector<2x32xf32>
    %cst_68 = arith.constant 1.000000e+00 : f32
    %286 = vector.broadcast %cst_68 : f32 to vector<2x32xf32>
    %287 = arith.addf %286, %285 : vector<2x32xf32>
    %288 = arith.divf %286, %287 : vector<2x32xf32>
    %289 = vector.extract_strided_slice %279 {offsets = [0, 32], sizes = [2, 32], strides = [1, 1]} : vector<2x96xf32> to vector<2x32xf32>
    %290 = vector.extract_strided_slice %280 {offsets = [0, 32], sizes = [2, 32], strides = [1, 1]} : vector<2x96xf32> to vector<2x32xf32>
    %291 = arith.addf %289, %290 : vector<2x32xf32>
    %292 = arith.negf %291 : vector<2x32xf32>
    %293 = math.exp %292 : vector<2x32xf32>
    %cst_69 = arith.constant 1.000000e+00 : f32
    %294 = vector.broadcast %cst_69 : f32 to vector<2x32xf32>
    %295 = arith.addf %294, %293 : vector<2x32xf32>
    %296 = arith.divf %294, %295 : vector<2x32xf32>
    %297 = vector.extract_strided_slice %279 {offsets = [0, 64], sizes = [2, 32], strides = [1, 1]} : vector<2x96xf32> to vector<2x32xf32>
    %298 = vector.extract_strided_slice %280 {offsets = [0, 64], sizes = [2, 32], strides = [1, 1]} : vector<2x96xf32> to vector<2x32xf32>
    %299 = arith.addf %298, %5 : vector<2x32xf32>
    %300 = arith.mulf %288, %299 : vector<2x32xf32>
    %301 = arith.addf %297, %300 : vector<2x32xf32>
    %302 = math.tanh %301 : vector<2x32xf32>
    %cst_70 = arith.constant 1.000000e+00 : f32
    %303 = vector.broadcast %cst_70 : f32 to vector<2x32xf32>
    %304 = arith.subf %303, %296 : vector<2x32xf32>
    %305 = arith.mulf %304, %302 : vector<2x32xf32>
    %306 = arith.mulf %296, %223 : vector<2x32xf32>
    %307 = arith.addf %305, %306 : vector<2x32xf32>
    %308 = vector.broadcast %c3_i32 : i32 to vector<2x1xi32>
    %309 = arith.cmpi sgt, %0, %308 : vector<2x1xi32>
    %310 = vector.shape_cast %309 : vector<2x1xi1> to vector<2x1xi1>
    %311 = vector.broadcast %310 : vector<2x1xi1> to vector<2x32xi1>
    %312 = arith.select %311, %307, %223 : vector<2x32xi1>, vector<2x32xf32>
    %cst_71 = arith.constant 0.000000e+00 : f32
    %313 = vector.shape_cast %309 : vector<2x1xi1> to vector<2x1xi1>
    %314 = vector.broadcast %313 : vector<2x1xi1> to vector<2x32xi1>
    %315 = vector.broadcast %cst_71 : f32 to vector<2x32xf32>
    %316 = arith.select %314, %312, %315 : vector<2x32xi1>, vector<2x32xf32>
    %317 = arith.index_cast %c3_i32 : i32 to index
    %c0_72 = arith.constant 0 : index
    %c0_73 = arith.constant 0 : index
    %318 = vector.load %arg7[%317, %c0_72, %c0_73] : memref<8x2x32xf32, #tpu.memory_space<vmem>>, vector<1x2x32xf32>
    %319 = vector.shape_cast %318 : vector<1x2x32xf32> to vector<2x32xf32>
    %320 = vector.shape_cast %316 : vector<2x32xf32> to vector<1x2x32xf32>
    tpu.vector_store %arg7[%317, %c0_72, %c0_73], %320 {strides = array<i32>} : memref<8x2x32xf32, #tpu.memory_space<vmem>>, vector<1x2x32xf32>,
    %c7_i32_74 = arith.constant 7 : i32
    %321 = arith.subi %c7_i32_74, %c3_i32 : i32
    %322 = arith.index_cast %321 : i32 to index
    %c0_75 = arith.constant 0 : index
    %c0_76 = arith.constant 0 : index
    %323 = vector.load %arg2[%322, %c0_75, %c0_76] : memref<8x2x96xf32, #tpu.memory_space<vmem>>, vector<1x2x96xf32>
    %324 = vector.shape_cast %323 : vector<1x2x96xf32> to vector<2x96xf32>
    %cst_77 = arith.constant dense<0.000000e+00> : vector<2x96xf32>
    %325 = tpu.matmul %268, %2, %cst_77 {dimension_numbers = #tpu.dot_dimension_numbers<[1], [0], [0], [1], [0, 0, 1, 1], [], []>} : vector<2x32xf32>, vector<32x96xf32>, vector<2x96xf32> -> vector<2x96xf32>
    %326 = vector.extract_strided_slice %324 {offsets = [0, 0], sizes = [2, 32], strides = [1, 1]} : vector<2x96xf32> to vector<2x32xf32>
    %327 = vector.extract_strided_slice %325 {offsets = [0, 0], sizes = [2, 32], strides = [1, 1]} : vector<2x96xf32> to vector<2x32xf32>
    %328 = arith.addf %326, %327 : vector<2x32xf32>
    %329 = arith.negf %328 : vector<2x32xf32>
    %330 = math.exp %329 : vector<2x32xf32>
    %cst_78 = arith.constant 1.000000e+00 : f32
    %331 = vector.broadcast %cst_78 : f32 to vector<2x32xf32>
    %332 = arith.addf %331, %330 : vector<2x32xf32>
    %333 = arith.divf %331, %332 : vector<2x32xf32>
    %334 = vector.extract_strided_slice %324 {offsets = [0, 32], sizes = [2, 32], strides = [1, 1]} : vector<2x96xf32> to vector<2x32xf32>
    %335 = vector.extract_strided_slice %325 {offsets = [0, 32], sizes = [2, 32], strides = [1, 1]} : vector<2x96xf32> to vector<2x32xf32>
    %336 = arith.addf %334, %335 : vector<2x32xf32>
    %337 = arith.negf %336 : vector<2x32xf32>
    %338 = math.exp %337 : vector<2x32xf32>
    %cst_79 = arith.constant 1.000000e+00 : f32
    %339 = vector.broadcast %cst_79 : f32 to vector<2x32xf32>
    %340 = arith.addf %339, %338 : vector<2x32xf32>
    %341 = arith.divf %339, %340 : vector<2x32xf32>
    %342 = vector.extract_strided_slice %324 {offsets = [0, 64], sizes = [2, 32], strides = [1, 1]} : vector<2x96xf32> to vector<2x32xf32>
    %343 = vector.extract_strided_slice %325 {offsets = [0, 64], sizes = [2, 32], strides = [1, 1]} : vector<2x96xf32> to vector<2x32xf32>
    %344 = arith.addf %343, %8 : vector<2x32xf32>
    %345 = arith.mulf %333, %344 : vector<2x32xf32>
    %346 = arith.addf %342, %345 : vector<2x32xf32>
    %347 = math.tanh %346 : vector<2x32xf32>
    %cst_80 = arith.constant 1.000000e+00 : f32
    %348 = vector.broadcast %cst_80 : f32 to vector<2x32xf32>
    %349 = arith.subf %348, %341 : vector<2x32xf32>
    %350 = arith.mulf %349, %347 : vector<2x32xf32>
    %351 = arith.mulf %341, %268 : vector<2x32xf32>
    %352 = arith.addf %350, %351 : vector<2x32xf32>
    %353 = vector.broadcast %321 : i32 to vector<2x1xi32>
    %354 = arith.cmpi sgt, %0, %353 : vector<2x1xi32>
    %355 = vector.shape_cast %354 : vector<2x1xi1> to vector<2x1xi1>
    %356 = vector.broadcast %355 : vector<2x1xi1> to vector<2x32xi1>
    %357 = arith.select %356, %352, %268 : vector<2x32xi1>, vector<2x32xf32>
    %cst_81 = arith.constant 0.000000e+00 : f32
    %358 = vector.shape_cast %354 : vector<2x1xi1> to vector<2x1xi1>
    %359 = vector.broadcast %358 : vector<2x1xi1> to vector<2x32xi1>
    %360 = vector.broadcast %cst_81 : f32 to vector<2x32xf32>
    %361 = arith.select %359, %357, %360 : vector<2x32xi1>, vector<2x32xf32>
    %362 = arith.index_cast %321 : i32 to index
    %c0_82 = arith.constant 0 : index
    %c0_83 = arith.constant 0 : index
    %363 = vector.load %arg8[%362, %c0_82, %c0_83] : memref<8x2x32xf32, #tpu.memory_space<vmem>>, vector<1x2x32xf32>
    %364 = vector.shape_cast %363 : vector<1x2x32xf32> to vector<2x32xf32>
    %365 = vector.shape_cast %361 : vector<2x32xf32> to vector<1x2x32xf32>
    tpu.vector_store %arg8[%362, %c0_82, %c0_83], %365 {strides = array<i32>} : memref<8x2x32xf32, #tpu.memory_space<vmem>>, vector<1x2x32xf32>,
    %c4_i32 = arith.constant 4 : i32
    %366 = arith.index_cast %c4_i32 : i32 to index
    %c0_84 = arith.constant 0 : index
    %c0_85 = arith.constant 0 : index
    %367 = vector.load %arg1[%366, %c0_84, %c0_85] : memref<8x2x96xf32, #tpu.memory_space<vmem>>, vector<1x2x96xf32>
    %368 = vector.shape_cast %367 : vector<1x2x96xf32> to vector<2x96xf32>
    %cst_86 = arith.constant dense<0.000000e+00> : vector<2x96xf32>
    %369 = tpu.matmul %312, %1, %cst_86 {dimension_numbers = #tpu.dot_dimension_numbers<[1], [0], [0], [1], [0, 0, 1, 1], [], []>} : vector<2x32xf32>, vector<32x96xf32>, vector<2x96xf32> -> vector<2x96xf32>
    %370 = vector.extract_strided_slice %368 {offsets = [0, 0], sizes = [2, 32], strides = [1, 1]} : vector<2x96xf32> to vector<2x32xf32>
    %371 = vector.extract_strided_slice %369 {offsets = [0, 0], sizes = [2, 32], strides = [1, 1]} : vector<2x96xf32> to vector<2x32xf32>
    %372 = arith.addf %370, %371 : vector<2x32xf32>
    %373 = arith.negf %372 : vector<2x32xf32>
    %374 = math.exp %373 : vector<2x32xf32>
    %cst_87 = arith.constant 1.000000e+00 : f32
    %375 = vector.broadcast %cst_87 : f32 to vector<2x32xf32>
    %376 = arith.addf %375, %374 : vector<2x32xf32>
    %377 = arith.divf %375, %376 : vector<2x32xf32>
    %378 = vector.extract_strided_slice %368 {offsets = [0, 32], sizes = [2, 32], strides = [1, 1]} : vector<2x96xf32> to vector<2x32xf32>
    %379 = vector.extract_strided_slice %369 {offsets = [0, 32], sizes = [2, 32], strides = [1, 1]} : vector<2x96xf32> to vector<2x32xf32>
    %380 = arith.addf %378, %379 : vector<2x32xf32>
    %381 = arith.negf %380 : vector<2x32xf32>
    %382 = math.exp %381 : vector<2x32xf32>
    %cst_88 = arith.constant 1.000000e+00 : f32
    %383 = vector.broadcast %cst_88 : f32 to vector<2x32xf32>
    %384 = arith.addf %383, %382 : vector<2x32xf32>
    %385 = arith.divf %383, %384 : vector<2x32xf32>
    %386 = vector.extract_strided_slice %368 {offsets = [0, 64], sizes = [2, 32], strides = [1, 1]} : vector<2x96xf32> to vector<2x32xf32>
    %387 = vector.extract_strided_slice %369 {offsets = [0, 64], sizes = [2, 32], strides = [1, 1]} : vector<2x96xf32> to vector<2x32xf32>
    %388 = arith.addf %387, %5 : vector<2x32xf32>
    %389 = arith.mulf %377, %388 : vector<2x32xf32>
    %390 = arith.addf %386, %389 : vector<2x32xf32>
    %391 = math.tanh %390 : vector<2x32xf32>
    %cst_89 = arith.constant 1.000000e+00 : f32
    %392 = vector.broadcast %cst_89 : f32 to vector<2x32xf32>
    %393 = arith.subf %392, %385 : vector<2x32xf32>
    %394 = arith.mulf %393, %391 : vector<2x32xf32>
    %395 = arith.mulf %385, %312 : vector<2x32xf32>
    %396 = arith.addf %394, %395 : vector<2x32xf32>
    %397 = vector.broadcast %c4_i32 : i32 to vector<2x1xi32>
    %398 = arith.cmpi sgt, %0, %397 : vector<2x1xi32>
    %399 = vector.shape_cast %398 : vector<2x1xi1> to vector<2x1xi1>
    %400 = vector.broadcast %399 : vector<2x1xi1> to vector<2x32xi1>
    %401 = arith.select %400, %396, %312 : vector<2x32xi1>, vector<2x32xf32>
    %cst_90 = arith.constant 0.000000e+00 : f32
    %402 = vector.shape_cast %398 : vector<2x1xi1> to vector<2x1xi1>
    %403 = vector.broadcast %402 : vector<2x1xi1> to vector<2x32xi1>
    %404 = vector.broadcast %cst_90 : f32 to vector<2x32xf32>
    %405 = arith.select %403, %401, %404 : vector<2x32xi1>, vector<2x32xf32>
    %406 = arith.index_cast %c4_i32 : i32 to index
    %c0_91 = arith.constant 0 : index
    %c0_92 = arith.constant 0 : index
    %407 = vector.load %arg7[%406, %c0_91, %c0_92] : memref<8x2x32xf32, #tpu.memory_space<vmem>>, vector<1x2x32xf32>
    %408 = vector.shape_cast %407 : vector<1x2x32xf32> to vector<2x32xf32>
    %409 = vector.shape_cast %405 : vector<2x32xf32> to vector<1x2x32xf32>
    tpu.vector_store %arg7[%406, %c0_91, %c0_92], %409 {strides = array<i32>} : memref<8x2x32xf32, #tpu.memory_space<vmem>>, vector<1x2x32xf32>,
    %c7_i32_93 = arith.constant 7 : i32
    %410 = arith.subi %c7_i32_93, %c4_i32 : i32
    %411 = arith.index_cast %410 : i32 to index
    %c0_94 = arith.constant 0 : index
    %c0_95 = arith.constant 0 : index
    %412 = vector.load %arg2[%411, %c0_94, %c0_95] : memref<8x2x96xf32, #tpu.memory_space<vmem>>, vector<1x2x96xf32>
    %413 = vector.shape_cast %412 : vector<1x2x96xf32> to vector<2x96xf32>
    %cst_96 = arith.constant dense<0.000000e+00> : vector<2x96xf32>
    %414 = tpu.matmul %357, %2, %cst_96 {dimension_numbers = #tpu.dot_dimension_numbers<[1], [0], [0], [1], [0, 0, 1, 1], [], []>} : vector<2x32xf32>, vector<32x96xf32>, vector<2x96xf32> -> vector<2x96xf32>
    %415 = vector.extract_strided_slice %413 {offsets = [0, 0], sizes = [2, 32], strides = [1, 1]} : vector<2x96xf32> to vector<2x32xf32>
    %416 = vector.extract_strided_slice %414 {offsets = [0, 0], sizes = [2, 32], strides = [1, 1]} : vector<2x96xf32> to vector<2x32xf32>
    %417 = arith.addf %415, %416 : vector<2x32xf32>
    %418 = arith.negf %417 : vector<2x32xf32>
    %419 = math.exp %418 : vector<2x32xf32>
    %cst_97 = arith.constant 1.000000e+00 : f32
    %420 = vector.broadcast %cst_97 : f32 to vector<2x32xf32>
    %421 = arith.addf %420, %419 : vector<2x32xf32>
    %422 = arith.divf %420, %421 : vector<2x32xf32>
    %423 = vector.extract_strided_slice %413 {offsets = [0, 32], sizes = [2, 32], strides = [1, 1]} : vector<2x96xf32> to vector<2x32xf32>
    %424 = vector.extract_strided_slice %414 {offsets = [0, 32], sizes = [2, 32], strides = [1, 1]} : vector<2x96xf32> to vector<2x32xf32>
    %425 = arith.addf %423, %424 : vector<2x32xf32>
    %426 = arith.negf %425 : vector<2x32xf32>
    %427 = math.exp %426 : vector<2x32xf32>
    %cst_98 = arith.constant 1.000000e+00 : f32
    %428 = vector.broadcast %cst_98 : f32 to vector<2x32xf32>
    %429 = arith.addf %428, %427 : vector<2x32xf32>
    %430 = arith.divf %428, %429 : vector<2x32xf32>
    %431 = vector.extract_strided_slice %413 {offsets = [0, 64], sizes = [2, 32], strides = [1, 1]} : vector<2x96xf32> to vector<2x32xf32>
    %432 = vector.extract_strided_slice %414 {offsets = [0, 64], sizes = [2, 32], strides = [1, 1]} : vector<2x96xf32> to vector<2x32xf32>
    %433 = arith.addf %432, %8 : vector<2x32xf32>
    %434 = arith.mulf %422, %433 : vector<2x32xf32>
    %435 = arith.addf %431, %434 : vector<2x32xf32>
    %436 = math.tanh %435 : vector<2x32xf32>
    %cst_99 = arith.constant 1.000000e+00 : f32
    %437 = vector.broadcast %cst_99 : f32 to vector<2x32xf32>
    %438 = arith.subf %437, %430 : vector<2x32xf32>
    %439 = arith.mulf %438, %436 : vector<2x32xf32>
    %440 = arith.mulf %430, %357 : vector<2x32xf32>
    %441 = arith.addf %439, %440 : vector<2x32xf32>
    %442 = vector.broadcast %410 : i32 to vector<2x1xi32>
    %443 = arith.cmpi sgt, %0, %442 : vector<2x1xi32>
    %444 = vector.shape_cast %443 : vector<2x1xi1> to vector<2x1xi1>
    %445 = vector.broadcast %444 : vector<2x1xi1> to vector<2x32xi1>
    %446 = arith.select %445, %441, %357 : vector<2x32xi1>, vector<2x32xf32>
    %cst_100 = arith.constant 0.000000e+00 : f32
    %447 = vector.shape_cast %443 : vector<2x1xi1> to vector<2x1xi1>
    %448 = vector.broadcast %447 : vector<2x1xi1> to vector<2x32xi1>
    %449 = vector.broadcast %cst_100 : f32 to vector<2x32xf32>
    %450 = arith.select %448, %446, %449 : vector<2x32xi1>, vector<2x32xf32>
    %451 = arith.index_cast %410 : i32 to index
    %c0_101 = arith.constant 0 : index
    %c0_102 = arith.constant 0 : index
    %452 = vector.load %arg8[%451, %c0_101, %c0_102] : memref<8x2x32xf32, #tpu.memory_space<vmem>>, vector<1x2x32xf32>
    %453 = vector.shape_cast %452 : vector<1x2x32xf32> to vector<2x32xf32>
    %454 = vector.shape_cast %450 : vector<2x32xf32> to vector<1x2x32xf32>
    tpu.vector_store %arg8[%451, %c0_101, %c0_102], %454 {strides = array<i32>} : memref<8x2x32xf32, #tpu.memory_space<vmem>>, vector<1x2x32xf32>,
    %c5_i32 = arith.constant 5 : i32
    %455 = arith.index_cast %c5_i32 : i32 to index
    %c0_103 = arith.constant 0 : index
    %c0_104 = arith.constant 0 : index
    %456 = vector.load %arg1[%455, %c0_103, %c0_104] : memref<8x2x96xf32, #tpu.memory_space<vmem>>, vector<1x2x96xf32>
    %457 = vector.shape_cast %456 : vector<1x2x96xf32> to vector<2x96xf32>
    %cst_105 = arith.constant dense<0.000000e+00> : vector<2x96xf32>
    %458 = tpu.matmul %401, %1, %cst_105 {dimension_numbers = #tpu.dot_dimension_numbers<[1], [0], [0], [1], [0, 0, 1, 1], [], []>} : vector<2x32xf32>, vector<32x96xf32>, vector<2x96xf32> -> vector<2x96xf32>
    %459 = vector.extract_strided_slice %457 {offsets = [0, 0], sizes = [2, 32], strides = [1, 1]} : vector<2x96xf32> to vector<2x32xf32>
    %460 = vector.extract_strided_slice %458 {offsets = [0, 0], sizes = [2, 32], strides = [1, 1]} : vector<2x96xf32> to vector<2x32xf32>
    %461 = arith.addf %459, %460 : vector<2x32xf32>
    %462 = arith.negf %461 : vector<2x32xf32>
    %463 = math.exp %462 : vector<2x32xf32>
    %cst_106 = arith.constant 1.000000e+00 : f32
    %464 = vector.broadcast %cst_106 : f32 to vector<2x32xf32>
    %465 = arith.addf %464, %463 : vector<2x32xf32>
    %466 = arith.divf %464, %465 : vector<2x32xf32>
    %467 = vector.extract_strided_slice %457 {offsets = [0, 32], sizes = [2, 32], strides = [1, 1]} : vector<2x96xf32> to vector<2x32xf32>
    %468 = vector.extract_strided_slice %458 {offsets = [0, 32], sizes = [2, 32], strides = [1, 1]} : vector<2x96xf32> to vector<2x32xf32>
    %469 = arith.addf %467, %468 : vector<2x32xf32>
    %470 = arith.negf %469 : vector<2x32xf32>
    %471 = math.exp %470 : vector<2x32xf32>
    %cst_107 = arith.constant 1.000000e+00 : f32
    %472 = vector.broadcast %cst_107 : f32 to vector<2x32xf32>
    %473 = arith.addf %472, %471 : vector<2x32xf32>
    %474 = arith.divf %472, %473 : vector<2x32xf32>
    %475 = vector.extract_strided_slice %457 {offsets = [0, 64], sizes = [2, 32], strides = [1, 1]} : vector<2x96xf32> to vector<2x32xf32>
    %476 = vector.extract_strided_slice %458 {offsets = [0, 64], sizes = [2, 32], strides = [1, 1]} : vector<2x96xf32> to vector<2x32xf32>
    %477 = arith.addf %476, %5 : vector<2x32xf32>
    %478 = arith.mulf %466, %477 : vector<2x32xf32>
    %479 = arith.addf %475, %478 : vector<2x32xf32>
    %480 = math.tanh %479 : vector<2x32xf32>
    %cst_108 = arith.constant 1.000000e+00 : f32
    %481 = vector.broadcast %cst_108 : f32 to vector<2x32xf32>
    %482 = arith.subf %481, %474 : vector<2x32xf32>
    %483 = arith.mulf %482, %480 : vector<2x32xf32>
    %484 = arith.mulf %474, %401 : vector<2x32xf32>
    %485 = arith.addf %483, %484 : vector<2x32xf32>
    %486 = vector.broadcast %c5_i32 : i32 to vector<2x1xi32>
    %487 = arith.cmpi sgt, %0, %486 : vector<2x1xi32>
    %488 = vector.shape_cast %487 : vector<2x1xi1> to vector<2x1xi1>
    %489 = vector.broadcast %488 : vector<2x1xi1> to vector<2x32xi1>
    %490 = arith.select %489, %485, %401 : vector<2x32xi1>, vector<2x32xf32>
    %cst_109 = arith.constant 0.000000e+00 : f32
    %491 = vector.shape_cast %487 : vector<2x1xi1> to vector<2x1xi1>
    %492 = vector.broadcast %491 : vector<2x1xi1> to vector<2x32xi1>
    %493 = vector.broadcast %cst_109 : f32 to vector<2x32xf32>
    %494 = arith.select %492, %490, %493 : vector<2x32xi1>, vector<2x32xf32>
    %495 = arith.index_cast %c5_i32 : i32 to index
    %c0_110 = arith.constant 0 : index
    %c0_111 = arith.constant 0 : index
    %496 = vector.load %arg7[%495, %c0_110, %c0_111] : memref<8x2x32xf32, #tpu.memory_space<vmem>>, vector<1x2x32xf32>
    %497 = vector.shape_cast %496 : vector<1x2x32xf32> to vector<2x32xf32>
    %498 = vector.shape_cast %494 : vector<2x32xf32> to vector<1x2x32xf32>
    tpu.vector_store %arg7[%495, %c0_110, %c0_111], %498 {strides = array<i32>} : memref<8x2x32xf32, #tpu.memory_space<vmem>>, vector<1x2x32xf32>,
    %c7_i32_112 = arith.constant 7 : i32
    %499 = arith.subi %c7_i32_112, %c5_i32 : i32
    %500 = arith.index_cast %499 : i32 to index
    %c0_113 = arith.constant 0 : index
    %c0_114 = arith.constant 0 : index
    %501 = vector.load %arg2[%500, %c0_113, %c0_114] : memref<8x2x96xf32, #tpu.memory_space<vmem>>, vector<1x2x96xf32>
    %502 = vector.shape_cast %501 : vector<1x2x96xf32> to vector<2x96xf32>
    %cst_115 = arith.constant dense<0.000000e+00> : vector<2x96xf32>
    %503 = tpu.matmul %446, %2, %cst_115 {dimension_numbers = #tpu.dot_dimension_numbers<[1], [0], [0], [1], [0, 0, 1, 1], [], []>} : vector<2x32xf32>, vector<32x96xf32>, vector<2x96xf32> -> vector<2x96xf32>
    %504 = vector.extract_strided_slice %502 {offsets = [0, 0], sizes = [2, 32], strides = [1, 1]} : vector<2x96xf32> to vector<2x32xf32>
    %505 = vector.extract_strided_slice %503 {offsets = [0, 0], sizes = [2, 32], strides = [1, 1]} : vector<2x96xf32> to vector<2x32xf32>
    %506 = arith.addf %504, %505 : vector<2x32xf32>
    %507 = arith.negf %506 : vector<2x32xf32>
    %508 = math.exp %507 : vector<2x32xf32>
    %cst_116 = arith.constant 1.000000e+00 : f32
    %509 = vector.broadcast %cst_116 : f32 to vector<2x32xf32>
    %510 = arith.addf %509, %508 : vector<2x32xf32>
    %511 = arith.divf %509, %510 : vector<2x32xf32>
    %512 = vector.extract_strided_slice %502 {offsets = [0, 32], sizes = [2, 32], strides = [1, 1]} : vector<2x96xf32> to vector<2x32xf32>
    %513 = vector.extract_strided_slice %503 {offsets = [0, 32], sizes = [2, 32], strides = [1, 1]} : vector<2x96xf32> to vector<2x32xf32>
    %514 = arith.addf %512, %513 : vector<2x32xf32>
    %515 = arith.negf %514 : vector<2x32xf32>
    %516 = math.exp %515 : vector<2x32xf32>
    %cst_117 = arith.constant 1.000000e+00 : f32
    %517 = vector.broadcast %cst_117 : f32 to vector<2x32xf32>
    %518 = arith.addf %517, %516 : vector<2x32xf32>
    %519 = arith.divf %517, %518 : vector<2x32xf32>
    %520 = vector.extract_strided_slice %502 {offsets = [0, 64], sizes = [2, 32], strides = [1, 1]} : vector<2x96xf32> to vector<2x32xf32>
    %521 = vector.extract_strided_slice %503 {offsets = [0, 64], sizes = [2, 32], strides = [1, 1]} : vector<2x96xf32> to vector<2x32xf32>
    %522 = arith.addf %521, %8 : vector<2x32xf32>
    %523 = arith.mulf %511, %522 : vector<2x32xf32>
    %524 = arith.addf %520, %523 : vector<2x32xf32>
    %525 = math.tanh %524 : vector<2x32xf32>
    %cst_118 = arith.constant 1.000000e+00 : f32
    %526 = vector.broadcast %cst_118 : f32 to vector<2x32xf32>
    %527 = arith.subf %526, %519 : vector<2x32xf32>
    %528 = arith.mulf %527, %525 : vector<2x32xf32>
    %529 = arith.mulf %519, %446 : vector<2x32xf32>
    %530 = arith.addf %528, %529 : vector<2x32xf32>
    %531 = vector.broadcast %499 : i32 to vector<2x1xi32>
    %532 = arith.cmpi sgt, %0, %531 : vector<2x1xi32>
    %533 = vector.shape_cast %532 : vector<2x1xi1> to vector<2x1xi1>
    %534 = vector.broadcast %533 : vector<2x1xi1> to vector<2x32xi1>
    %535 = arith.select %534, %530, %446 : vector<2x32xi1>, vector<2x32xf32>
    %cst_119 = arith.constant 0.000000e+00 : f32
    %536 = vector.shape_cast %532 : vector<2x1xi1> to vector<2x1xi1>
    %537 = vector.broadcast %536 : vector<2x1xi1> to vector<2x32xi1>
    %538 = vector.broadcast %cst_119 : f32 to vector<2x32xf32>
    %539 = arith.select %537, %535, %538 : vector<2x32xi1>, vector<2x32xf32>
    %540 = arith.index_cast %499 : i32 to index
    %c0_120 = arith.constant 0 : index
    %c0_121 = arith.constant 0 : index
    %541 = vector.load %arg8[%540, %c0_120, %c0_121] : memref<8x2x32xf32, #tpu.memory_space<vmem>>, vector<1x2x32xf32>
    %542 = vector.shape_cast %541 : vector<1x2x32xf32> to vector<2x32xf32>
    %543 = vector.shape_cast %539 : vector<2x32xf32> to vector<1x2x32xf32>
    tpu.vector_store %arg8[%540, %c0_120, %c0_121], %543 {strides = array<i32>} : memref<8x2x32xf32, #tpu.memory_space<vmem>>, vector<1x2x32xf32>,
    %c6_i32 = arith.constant 6 : i32
    %544 = arith.index_cast %c6_i32 : i32 to index
    %c0_122 = arith.constant 0 : index
    %c0_123 = arith.constant 0 : index
    %545 = vector.load %arg1[%544, %c0_122, %c0_123] : memref<8x2x96xf32, #tpu.memory_space<vmem>>, vector<1x2x96xf32>
    %546 = vector.shape_cast %545 : vector<1x2x96xf32> to vector<2x96xf32>
    %cst_124 = arith.constant dense<0.000000e+00> : vector<2x96xf32>
    %547 = tpu.matmul %490, %1, %cst_124 {dimension_numbers = #tpu.dot_dimension_numbers<[1], [0], [0], [1], [0, 0, 1, 1], [], []>} : vector<2x32xf32>, vector<32x96xf32>, vector<2x96xf32> -> vector<2x96xf32>
    %548 = vector.extract_strided_slice %546 {offsets = [0, 0], sizes = [2, 32], strides = [1, 1]} : vector<2x96xf32> to vector<2x32xf32>
    %549 = vector.extract_strided_slice %547 {offsets = [0, 0], sizes = [2, 32], strides = [1, 1]} : vector<2x96xf32> to vector<2x32xf32>
    %550 = arith.addf %548, %549 : vector<2x32xf32>
    %551 = arith.negf %550 : vector<2x32xf32>
    %552 = math.exp %551 : vector<2x32xf32>
    %cst_125 = arith.constant 1.000000e+00 : f32
    %553 = vector.broadcast %cst_125 : f32 to vector<2x32xf32>
    %554 = arith.addf %553, %552 : vector<2x32xf32>
    %555 = arith.divf %553, %554 : vector<2x32xf32>
    %556 = vector.extract_strided_slice %546 {offsets = [0, 32], sizes = [2, 32], strides = [1, 1]} : vector<2x96xf32> to vector<2x32xf32>
    %557 = vector.extract_strided_slice %547 {offsets = [0, 32], sizes = [2, 32], strides = [1, 1]} : vector<2x96xf32> to vector<2x32xf32>
    %558 = arith.addf %556, %557 : vector<2x32xf32>
    %559 = arith.negf %558 : vector<2x32xf32>
    %560 = math.exp %559 : vector<2x32xf32>
    %cst_126 = arith.constant 1.000000e+00 : f32
    %561 = vector.broadcast %cst_126 : f32 to vector<2x32xf32>
    %562 = arith.addf %561, %560 : vector<2x32xf32>
    %563 = arith.divf %561, %562 : vector<2x32xf32>
    %564 = vector.extract_strided_slice %546 {offsets = [0, 64], sizes = [2, 32], strides = [1, 1]} : vector<2x96xf32> to vector<2x32xf32>
    %565 = vector.extract_strided_slice %547 {offsets = [0, 64], sizes = [2, 32], strides = [1, 1]} : vector<2x96xf32> to vector<2x32xf32>
    %566 = arith.addf %565, %5 : vector<2x32xf32>
    %567 = arith.mulf %555, %566 : vector<2x32xf32>
    %568 = arith.addf %564, %567 : vector<2x32xf32>
    %569 = math.tanh %568 : vector<2x32xf32>
    %cst_127 = arith.constant 1.000000e+00 : f32
    %570 = vector.broadcast %cst_127 : f32 to vector<2x32xf32>
    %571 = arith.subf %570, %563 : vector<2x32xf32>
    %572 = arith.mulf %571, %569 : vector<2x32xf32>
    %573 = arith.mulf %563, %490 : vector<2x32xf32>
    %574 = arith.addf %572, %573 : vector<2x32xf32>
    %575 = vector.broadcast %c6_i32 : i32 to vector<2x1xi32>
    %576 = arith.cmpi sgt, %0, %575 : vector<2x1xi32>
    %577 = vector.shape_cast %576 : vector<2x1xi1> to vector<2x1xi1>
    %578 = vector.broadcast %577 : vector<2x1xi1> to vector<2x32xi1>
    %579 = arith.select %578, %574, %490 : vector<2x32xi1>, vector<2x32xf32>
    %cst_128 = arith.constant 0.000000e+00 : f32
    %580 = vector.shape_cast %576 : vector<2x1xi1> to vector<2x1xi1>
    %581 = vector.broadcast %580 : vector<2x1xi1> to vector<2x32xi1>
    %582 = vector.broadcast %cst_128 : f32 to vector<2x32xf32>
    %583 = arith.select %581, %579, %582 : vector<2x32xi1>, vector<2x32xf32>
    %584 = arith.index_cast %c6_i32 : i32 to index
    %c0_129 = arith.constant 0 : index
    %c0_130 = arith.constant 0 : index
    %585 = vector.load %arg7[%584, %c0_129, %c0_130] : memref<8x2x32xf32, #tpu.memory_space<vmem>>, vector<1x2x32xf32>
    %586 = vector.shape_cast %585 : vector<1x2x32xf32> to vector<2x32xf32>
    %587 = vector.shape_cast %583 : vector<2x32xf32> to vector<1x2x32xf32>
    tpu.vector_store %arg7[%584, %c0_129, %c0_130], %587 {strides = array<i32>} : memref<8x2x32xf32, #tpu.memory_space<vmem>>, vector<1x2x32xf32>,
    %c7_i32_131 = arith.constant 7 : i32
    %588 = arith.subi %c7_i32_131, %c6_i32 : i32
    %589 = arith.index_cast %588 : i32 to index
    %c0_132 = arith.constant 0 : index
    %c0_133 = arith.constant 0 : index
    %590 = vector.load %arg2[%589, %c0_132, %c0_133] : memref<8x2x96xf32, #tpu.memory_space<vmem>>, vector<1x2x96xf32>
    %591 = vector.shape_cast %590 : vector<1x2x96xf32> to vector<2x96xf32>
    %cst_134 = arith.constant dense<0.000000e+00> : vector<2x96xf32>
    %592 = tpu.matmul %535, %2, %cst_134 {dimension_numbers = #tpu.dot_dimension_numbers<[1], [0], [0], [1], [0, 0, 1, 1], [], []>} : vector<2x32xf32>, vector<32x96xf32>, vector<2x96xf32> -> vector<2x96xf32>
    %593 = vector.extract_strided_slice %591 {offsets = [0, 0], sizes = [2, 32], strides = [1, 1]} : vector<2x96xf32> to vector<2x32xf32>
    %594 = vector.extract_strided_slice %592 {offsets = [0, 0], sizes = [2, 32], strides = [1, 1]} : vector<2x96xf32> to vector<2x32xf32>
    %595 = arith.addf %593, %594 : vector<2x32xf32>
    %596 = arith.negf %595 : vector<2x32xf32>
    %597 = math.exp %596 : vector<2x32xf32>
    %cst_135 = arith.constant 1.000000e+00 : f32
    %598 = vector.broadcast %cst_135 : f32 to vector<2x32xf32>
    %599 = arith.addf %598, %597 : vector<2x32xf32>
    %600 = arith.divf %598, %599 : vector<2x32xf32>
    %601 = vector.extract_strided_slice %591 {offsets = [0, 32], sizes = [2, 32], strides = [1, 1]} : vector<2x96xf32> to vector<2x32xf32>
    %602 = vector.extract_strided_slice %592 {offsets = [0, 32], sizes = [2, 32], strides = [1, 1]} : vector<2x96xf32> to vector<2x32xf32>
    %603 = arith.addf %601, %602 : vector<2x32xf32>
    %604 = arith.negf %603 : vector<2x32xf32>
    %605 = math.exp %604 : vector<2x32xf32>
    %cst_136 = arith.constant 1.000000e+00 : f32
    %606 = vector.broadcast %cst_136 : f32 to vector<2x32xf32>
    %607 = arith.addf %606, %605 : vector<2x32xf32>
    %608 = arith.divf %606, %607 : vector<2x32xf32>
    %609 = vector.extract_strided_slice %591 {offsets = [0, 64], sizes = [2, 32], strides = [1, 1]} : vector<2x96xf32> to vector<2x32xf32>
    %610 = vector.extract_strided_slice %592 {offsets = [0, 64], sizes = [2, 32], strides = [1, 1]} : vector<2x96xf32> to vector<2x32xf32>
    %611 = arith.addf %610, %8 : vector<2x32xf32>
    %612 = arith.mulf %600, %611 : vector<2x32xf32>
    %613 = arith.addf %609, %612 : vector<2x32xf32>
    %614 = math.tanh %613 : vector<2x32xf32>
    %cst_137 = arith.constant 1.000000e+00 : f32
    %615 = vector.broadcast %cst_137 : f32 to vector<2x32xf32>
    %616 = arith.subf %615, %608 : vector<2x32xf32>
    %617 = arith.mulf %616, %614 : vector<2x32xf32>
    %618 = arith.mulf %608, %535 : vector<2x32xf32>
    %619 = arith.addf %617, %618 : vector<2x32xf32>
    %620 = vector.broadcast %588 : i32 to vector<2x1xi32>
    %621 = arith.cmpi sgt, %0, %620 : vector<2x1xi32>
    %622 = vector.shape_cast %621 : vector<2x1xi1> to vector<2x1xi1>
    %623 = vector.broadcast %622 : vector<2x1xi1> to vector<2x32xi1>
    %624 = arith.select %623, %619, %535 : vector<2x32xi1>, vector<2x32xf32>
    %cst_138 = arith.constant 0.000000e+00 : f32
    %625 = vector.shape_cast %621 : vector<2x1xi1> to vector<2x1xi1>
    %626 = vector.broadcast %625 : vector<2x1xi1> to vector<2x32xi1>
    %627 = vector.broadcast %cst_138 : f32 to vector<2x32xf32>
    %628 = arith.select %626, %624, %627 : vector<2x32xi1>, vector<2x32xf32>
    %629 = arith.index_cast %588 : i32 to index
    %c0_139 = arith.constant 0 : index
    %c0_140 = arith.constant 0 : index
    %630 = vector.load %arg8[%629, %c0_139, %c0_140] : memref<8x2x32xf32, #tpu.memory_space<vmem>>, vector<1x2x32xf32>
    %631 = vector.shape_cast %630 : vector<1x2x32xf32> to vector<2x32xf32>
    %632 = vector.shape_cast %628 : vector<2x32xf32> to vector<1x2x32xf32>
    tpu.vector_store %arg8[%629, %c0_139, %c0_140], %632 {strides = array<i32>} : memref<8x2x32xf32, #tpu.memory_space<vmem>>, vector<1x2x32xf32>,
    %c7_i32_141 = arith.constant 7 : i32
    %633 = arith.index_cast %c7_i32_141 : i32 to index
    %c0_142 = arith.constant 0 : index
    %c0_143 = arith.constant 0 : index
    %634 = vector.load %arg1[%633, %c0_142, %c0_143] : memref<8x2x96xf32, #tpu.memory_space<vmem>>, vector<1x2x96xf32>
    %635 = vector.shape_cast %634 : vector<1x2x96xf32> to vector<2x96xf32>
    %cst_144 = arith.constant dense<0.000000e+00> : vector<2x96xf32>
    %636 = tpu.matmul %579, %1, %cst_144 {dimension_numbers = #tpu.dot_dimension_numbers<[1], [0], [0], [1], [0, 0, 1, 1], [], []>} : vector<2x32xf32>, vector<32x96xf32>, vector<2x96xf32> -> vector<2x96xf32>
    %637 = vector.extract_strided_slice %635 {offsets = [0, 0], sizes = [2, 32], strides = [1, 1]} : vector<2x96xf32> to vector<2x32xf32>
    %638 = vector.extract_strided_slice %636 {offsets = [0, 0], sizes = [2, 32], strides = [1, 1]} : vector<2x96xf32> to vector<2x32xf32>
    %639 = arith.addf %637, %638 : vector<2x32xf32>
    %640 = arith.negf %639 : vector<2x32xf32>
    %641 = math.exp %640 : vector<2x32xf32>
    %cst_145 = arith.constant 1.000000e+00 : f32
    %642 = vector.broadcast %cst_145 : f32 to vector<2x32xf32>
    %643 = arith.addf %642, %641 : vector<2x32xf32>
    %644 = arith.divf %642, %643 : vector<2x32xf32>
    %645 = vector.extract_strided_slice %635 {offsets = [0, 32], sizes = [2, 32], strides = [1, 1]} : vector<2x96xf32> to vector<2x32xf32>
    %646 = vector.extract_strided_slice %636 {offsets = [0, 32], sizes = [2, 32], strides = [1, 1]} : vector<2x96xf32> to vector<2x32xf32>
    %647 = arith.addf %645, %646 : vector<2x32xf32>
    %648 = arith.negf %647 : vector<2x32xf32>
    %649 = math.exp %648 : vector<2x32xf32>
    %cst_146 = arith.constant 1.000000e+00 : f32
    %650 = vector.broadcast %cst_146 : f32 to vector<2x32xf32>
    %651 = arith.addf %650, %649 : vector<2x32xf32>
    %652 = arith.divf %650, %651 : vector<2x32xf32>
    %653 = vector.extract_strided_slice %635 {offsets = [0, 64], sizes = [2, 32], strides = [1, 1]} : vector<2x96xf32> to vector<2x32xf32>
    %654 = vector.extract_strided_slice %636 {offsets = [0, 64], sizes = [2, 32], strides = [1, 1]} : vector<2x96xf32> to vector<2x32xf32>
    %655 = arith.addf %654, %5 : vector<2x32xf32>
    %656 = arith.mulf %644, %655 : vector<2x32xf32>
    %657 = arith.addf %653, %656 : vector<2x32xf32>
    %658 = math.tanh %657 : vector<2x32xf32>
    %cst_147 = arith.constant 1.000000e+00 : f32
    %659 = vector.broadcast %cst_147 : f32 to vector<2x32xf32>
    %660 = arith.subf %659, %652 : vector<2x32xf32>
    %661 = arith.mulf %660, %658 : vector<2x32xf32>
    %662 = arith.mulf %652, %579 : vector<2x32xf32>
    %663 = arith.addf %661, %662 : vector<2x32xf32>
    %664 = vector.broadcast %c7_i32_141 : i32 to vector<2x1xi32>
    %665 = arith.cmpi sgt, %0, %664 : vector<2x1xi32>
    %666 = vector.shape_cast %665 : vector<2x1xi1> to vector<2x1xi1>
    %667 = vector.broadcast %666 : vector<2x1xi1> to vector<2x32xi1>
    %668 = arith.select %667, %663, %579 : vector<2x32xi1>, vector<2x32xf32>
    %cst_148 = arith.constant 0.000000e+00 : f32
    %669 = vector.shape_cast %665 : vector<2x1xi1> to vector<2x1xi1>
    %670 = vector.broadcast %669 : vector<2x1xi1> to vector<2x32xi1>
    %671 = vector.broadcast %cst_148 : f32 to vector<2x32xf32>
    %672 = arith.select %670, %668, %671 : vector<2x32xi1>, vector<2x32xf32>
    %673 = arith.index_cast %c7_i32_141 : i32 to index
    %c0_149 = arith.constant 0 : index
    %c0_150 = arith.constant 0 : index
    %674 = vector.load %arg7[%673, %c0_149, %c0_150] : memref<8x2x32xf32, #tpu.memory_space<vmem>>, vector<1x2x32xf32>
    %675 = vector.shape_cast %674 : vector<1x2x32xf32> to vector<2x32xf32>
    %676 = vector.shape_cast %672 : vector<2x32xf32> to vector<1x2x32xf32>
    tpu.vector_store %arg7[%673, %c0_149, %c0_150], %676 {strides = array<i32>} : memref<8x2x32xf32, #tpu.memory_space<vmem>>, vector<1x2x32xf32>,
    %c7_i32_151 = arith.constant 7 : i32
    %677 = arith.subi %c7_i32_151, %c7_i32_141 : i32
    %678 = arith.index_cast %677 : i32 to index
    %c0_152 = arith.constant 0 : index
    %c0_153 = arith.constant 0 : index
    %679 = vector.load %arg2[%678, %c0_152, %c0_153] : memref<8x2x96xf32, #tpu.memory_space<vmem>>, vector<1x2x96xf32>
    %680 = vector.shape_cast %679 : vector<1x2x96xf32> to vector<2x96xf32>
    %cst_154 = arith.constant dense<0.000000e+00> : vector<2x96xf32>
    %681 = tpu.matmul %624, %2, %cst_154 {dimension_numbers = #tpu.dot_dimension_numbers<[1], [0], [0], [1], [0, 0, 1, 1], [], []>} : vector<2x32xf32>, vector<32x96xf32>, vector<2x96xf32> -> vector<2x96xf32>
    %682 = vector.extract_strided_slice %680 {offsets = [0, 0], sizes = [2, 32], strides = [1, 1]} : vector<2x96xf32> to vector<2x32xf32>
    %683 = vector.extract_strided_slice %681 {offsets = [0, 0], sizes = [2, 32], strides = [1, 1]} : vector<2x96xf32> to vector<2x32xf32>
    %684 = arith.addf %682, %683 : vector<2x32xf32>
    %685 = arith.negf %684 : vector<2x32xf32>
    %686 = math.exp %685 : vector<2x32xf32>
    %cst_155 = arith.constant 1.000000e+00 : f32
    %687 = vector.broadcast %cst_155 : f32 to vector<2x32xf32>
    %688 = arith.addf %687, %686 : vector<2x32xf32>
    %689 = arith.divf %687, %688 : vector<2x32xf32>
    %690 = vector.extract_strided_slice %680 {offsets = [0, 32], sizes = [2, 32], strides = [1, 1]} : vector<2x96xf32> to vector<2x32xf32>
    %691 = vector.extract_strided_slice %681 {offsets = [0, 32], sizes = [2, 32], strides = [1, 1]} : vector<2x96xf32> to vector<2x32xf32>
    %692 = arith.addf %690, %691 : vector<2x32xf32>
    %693 = arith.negf %692 : vector<2x32xf32>
    %694 = math.exp %693 : vector<2x32xf32>
    %cst_156 = arith.constant 1.000000e+00 : f32
    %695 = vector.broadcast %cst_156 : f32 to vector<2x32xf32>
    %696 = arith.addf %695, %694 : vector<2x32xf32>
    %697 = arith.divf %695, %696 : vector<2x32xf32>
    %698 = vector.extract_strided_slice %680 {offsets = [0, 64], sizes = [2, 32], strides = [1, 1]} : vector<2x96xf32> to vector<2x32xf32>
    %699 = vector.extract_strided_slice %681 {offsets = [0, 64], sizes = [2, 32], strides = [1, 1]} : vector<2x96xf32> to vector<2x32xf32>
    %700 = arith.addf %699, %8 : vector<2x32xf32>
    %701 = arith.mulf %689, %700 : vector<2x32xf32>
    %702 = arith.addf %698, %701 : vector<2x32xf32>
    %703 = math.tanh %702 : vector<2x32xf32>
    %cst_157 = arith.constant 1.000000e+00 : f32
    %704 = vector.broadcast %cst_157 : f32 to vector<2x32xf32>
    %705 = arith.subf %704, %697 : vector<2x32xf32>
    %706 = arith.mulf %705, %703 : vector<2x32xf32>
    %707 = arith.mulf %697, %624 : vector<2x32xf32>
    %708 = arith.addf %706, %707 : vector<2x32xf32>
    %709 = vector.broadcast %677 : i32 to vector<2x1xi32>
    %710 = arith.cmpi sgt, %0, %709 : vector<2x1xi32>
    %711 = vector.shape_cast %710 : vector<2x1xi1> to vector<2x1xi1>
    %712 = vector.broadcast %711 : vector<2x1xi1> to vector<2x32xi1>
    %713 = arith.select %712, %708, %624 : vector<2x32xi1>, vector<2x32xf32>
    %cst_158 = arith.constant 0.000000e+00 : f32
    %714 = vector.shape_cast %710 : vector<2x1xi1> to vector<2x1xi1>
    %715 = vector.broadcast %714 : vector<2x1xi1> to vector<2x32xi1>
    %716 = vector.broadcast %cst_158 : f32 to vector<2x32xf32>
    %717 = arith.select %715, %713, %716 : vector<2x32xi1>, vector<2x32xf32>
    %718 = arith.index_cast %677 : i32 to index
    %c0_159 = arith.constant 0 : index
    %c0_160 = arith.constant 0 : index
    %719 = vector.load %arg8[%718, %c0_159, %c0_160] : memref<8x2x32xf32, #tpu.memory_space<vmem>>, vector<1x2x32xf32>
    %720 = vector.shape_cast %719 : vector<1x2x32xf32> to vector<2x32xf32>
    %721 = vector.shape_cast %717 : vector<2x32xf32> to vector<1x2x32xf32>
    tpu.vector_store %arg8[%718, %c0_159, %c0_160], %721 {strides = array<i32>} : memref<8x2x32xf32, #tpu.memory_space<vmem>>, vector<1x2x32xf32>,
    %c8_i32 = arith.constant 8 : i32
    %c0_161 = arith.constant 0 : index
    %c0_162 = arith.constant 0 : index
    %c0_163 = arith.constant 0 : index
    %722 = vector.load %arg7[%c0_161, %c0_162, %c0_163] : memref<8x2x32xf32, #tpu.memory_space<vmem>>, vector<8x2x32xf32>
    %c0_164 = arith.constant 0 : index
    %c0_165 = arith.constant 0 : index
    %c0_166 = arith.constant 0 : index
    %723 = vector.load %arg8[%c0_164, %c0_165, %c0_166] : memref<8x2x32xf32, #tpu.memory_space<vmem>>, vector<8x2x32xf32>
    %724 = arith.addf %722, %723 : vector<8x2x32xf32>
    %cst_167 = arith.constant 5.000000e-01 : f32
    %725 = vector.broadcast %cst_167 : f32 to vector<8x2x32xf32>
    %726 = arith.mulf %725, %724 : vector<8x2x32xf32>
    %727 = arith.mulf %726, %726 : vector<8x2x32xf32>
    %cst_168 = arith.constant dense<0.000000e+00> : vector<8x2xf32>
    %728 = vector.multi_reduction <add>, %727, %cst_168 [2] : vector<8x2x32xf32> to vector<8x2xf32>
    %729 = vector.shape_cast %728 : vector<8x2xf32> to vector<8x2x1xf32>
    %cst_169 = arith.constant 1.000000e-16 : f32
    %730 = vector.broadcast %cst_169 : f32 to vector<8x2x1xf32>
    %731 = arith.addf %729, %730 : vector<8x2x1xf32>
    %732 = math.rsqrt %731 : vector<8x2x1xf32>
    %733 = vector.broadcast %732 : vector<8x2x1xf32> to vector<8x2x32xf32>
    %734 = arith.mulf %726, %733 : vector<8x2x32xf32>
    %c0_170 = arith.constant 0 : index
    %c0_171 = arith.constant 0 : index
    %c0_172 = arith.constant 0 : index
    %735 = vector.load %arg7[%c0_170, %c0_171, %c0_172] : memref<8x2x32xf32, #tpu.memory_space<vmem>>, vector<8x2x32xf32>
    tpu.vector_store %arg7[%c0_170, %c0_171, %c0_172], %734 {strides = array<i32>} : memref<8x2x32xf32, #tpu.memory_space<vmem>>, vector<8x2x32xf32>,
    return
  }
}

</mosaic_0001>

<llo_original>
// kernel: glove_rnn_encoder_forward.1
$region0: #{glove_rnn_encoder_forward.1}
  #allocation0 [shape = 'u32[]', space=smem, size = 0x4, offset = 0x4, fixed_abs, tag = 'smem constant byte address 0x4 - core index']
  #allocation1 [shape = 'u32[72,128]{1,0:T(1,128)}', space=vmem, size = 0x9000, scoped, tag = 'internal scratch']
  #allocation2 [shape = 'f32[8,2,32]{2,1,0:T(2,128)}', space=vmem, size = 0x2000, scoped, tag = 'scratch operand']
  %s0 = inlined_call_operand.vmem [shape: s32[2,1], index: 0, kind: input, shape index: {}]
  %s1 = inlined_call_operand.vmem [shape: f32[8,2,96], index: 1, kind: input, shape index: {}]
  %s2 = inlined_call_operand.vmem [shape: f32[8,2,96], index: 2, kind: input, shape index: {}]
  %s3 = inlined_call_operand.vmem [shape: f32[32,96], index: 3, kind: input, shape index: {}]
  %s4 = inlined_call_operand.vmem [shape: f32[32,96], index: 4, kind: input, shape index: {}]
  %s5 = inlined_call_operand.vmem [shape: f32[1,32], index: 5, kind: input, shape index: {}]
  %s6 = inlined_call_operand.vmem [shape: f32[1,32], index: 6, kind: input, shape index: {}]
  %s7 = inlined_call_operand.vmem [shape: f32[8,2,32], index: 7, kind: output, shape index: {}]
  %s8 = sld [smem:[#allocation0]]
  $region38: #{glove_rnn_encoder_forward.1} parent=0
    _
  %s10 = ssub.s32 1, %s8
  %s11 = scalar_select 0, %s10, %s8
  // Predicated region
  $region2: #{glove_rnn_encoder_forward.1} parent=0 // pred_check
    _
  $region3: #{glove_rnn_encoder_forward.1} parent=0 // pred_check_branch
    %13 = sbr.rel (0) target = $region5
  $region4: #{glove_rnn_encoder_forward.1} parent=0 // pred_region
    _
  $region5: #{glove_rnn_encoder_forward.1} parent=0 // pred_fallthru
    _
  // Predicated region
  $region6: #{glove_rnn_encoder_forward.1} parent=0 // pred_check
    _
  $region7: #{glove_rnn_encoder_forward.1} parent=0 // pred_check_branch
    %15 = sbr.rel (0) target = $region9
  $region8: #{glove_rnn_encoder_forward.1} parent=0 // pred_region
    _
  $region9: #{glove_rnn_encoder_forward.1} parent=0 // pred_fallthru
    _
  // Predicated region
  $region10: #{glove_rnn_encoder_forward.1} parent=0 // pred_check
    _
  $region11: #{glove_rnn_encoder_forward.1} parent=0 // pred_check_branch
    %17 = sbr.rel (0) target = $region13
  $region12: #{glove_rnn_encoder_forward.1} parent=0 // pred_region
    _
  $region13: #{glove_rnn_encoder_forward.1} parent=0 // pred_fallthru
    _
  // Predicated region
  $region14: #{glove_rnn_encoder_forward.1} parent=0 // pred_check
    _
  $region15: #{glove_rnn_encoder_forward.1} parent=0 // pred_check_branch
    %19 = sbr.rel (0) target = $region17
  $region16: #{glove_rnn_encoder_forward.1} parent=0 // pred_region
    _
  $region17: #{glove_rnn_encoder_forward.1} parent=0 // pred_fallthru
    _
  // Predicated region
  $region18: #{glove_rnn_encoder_forward.1} parent=0 // pred_check
    _
  $region19: #{glove_rnn_encoder_forward.1} parent=0 // pred_check_branch
    %21 = sbr.rel (0) target = $region21
  $region20: #{glove_rnn_encoder_forward.1} parent=0 // pred_region
    _
  $region21: #{glove_rnn_encoder_forward.1} parent=0 // pred_fallthru
    _
  // Predicated region
  $region22: #{glove_rnn_encoder_forward.1} parent=0 // pred_check
    _
  $region23: #{glove_rnn_encoder_forward.1} parent=0 // pred_check_branch
    %23 = sbr.rel (0) target = $region25
  $region24: #{glove_rnn_encoder_forward.1} parent=0 // pred_region
    _
  $region25: #{glove_rnn_encoder_forward.1} parent=0 // pred_fallthru
    _
  // Predicated region
  $region26: #{glove_rnn_encoder_forward.1} parent=0 // pred_check
    _
  $region27: #{glove_rnn_encoder_forward.1} parent=0 // pred_check_branch
    %25 = sbr.rel (0) target = $region29
  $region28: #{glove_rnn_encoder_forward.1} parent=0 // pred_region
    _
  $region29: #{glove_rnn_encoder_forward.1} parent=0 // pred_fallthru
    _
  %v26 = vld [vmem:[%s0] sm:$0x3]
  %v27 = vld [vmem:[%s3] sm:$0xff]
  %v28 = vld [vmem:[%s3 + $0x8] sm:$0xff]
  %v29 = vld [vmem:[%s3 + $0x10] sm:$0xff]
  %v30 = vld [vmem:[%s3 + $0x18] sm:$0xff]
  %v31 = vld [vmem:[%s4] sm:$0xff]
  %v32 = vld [vmem:[%s4 + $0x8] sm:$0xff]
  %v33 = vld [vmem:[%s4 + $0x10] sm:$0xff]
  %v34 = vld [vmem:[%s4 + $0x18] sm:$0xff]
  %v35 = vld [vmem:[%s5] sm:$0x1]
  %v37 = vperm.slane %v35, 0
  %v38 = vld [vmem:[%s6] sm:$0x1]
  %v40 = vperm.slane %v38, 0
  %v41 = vld [vmem:[%s1] sm:$0x3]
  %vm42 = vcmask 261120
  %v44 = vsel %vm42, 0.0, 0
  %46 = vmatpush.msra.mxu0 0.0
  %47 = vmatpush.msra.mxu0 0.0
  %48 = vmatpush.msra.mxu0 0.0
  %49 = vmatpush.msra.mxu0 0.0
  %50 = vmatpush.msra.mxu0 0.0
  %51 = vmatpush.msra.mxu0 0.0
  %52 = vmatpush.msra.mxu0 0.0
  %53 = vmatpush.msra.mxu0 0.0
  %54 = vmatpush.msra.mxu0 0.0
  %55 = vmatpush.msra.mxu0 0.0
  %56 = vmatpush.msra.mxu0 0.0
  %57 = vmatpush.msra.mxu0 0.0
  %58 = vmatpush.msra.mxu0 %v30
  %59 = vmatpush.msra.mxu0 %v29
  %60 = vmatpush.msra.mxu0 %v28
  %61 = vmatpush.msra.mxu0 %v27
  %62 = vmatmul.f32.gmra.mxu0 %v44
  %v63 = vpop.f32.mrf.mxu0
  %v64 = vadd.f32 0.0, %v63
  %65 = vdwg.mxu0
  %v66 = vadd.f32 %v41, %v64
  %v67 = vxor.u32 %v66, 2147483648
  %v68 = vmul.f32 %v67, 1.442695
  %v69 = vpow.pop %v68
  %v70 = vadd.f32 %v69, 1.0
  %v71 = vrcp.pop %v70
  %v72 = vmul.f32 %v70, %v71
  %v73 = vsub.f32 1.0, %v72
  %v74 = vmul.f32 %v71, %v73
  %v75 = vadd.f32 %v71, %v74
  %vm76 = vweird.f32 %v70
  %vm77 = vweird.f32 %v71
  %vm78 = vmor %vm76, %vm77
  %v79 = vsel %vm78, %v71, %v75
  %v80 = vand.u32 2147483647, %v70
  %vm81 = vcmp.eq.f32.partialorder %v80, 8.507059e+37
  %v82 = vand.u32 %v70, 2147483648
  %v83 = vor.u32 1.1754944e-38, %v82
  %v84 = vsel %vm81, %v83, %v79
  %v85 = vmul.f32 1.0, %v84
  %86 = vrot.lane.b32.xlu0 %v37, 64
  %v87 = vpop.permute.xlu0 %86
  %v89 = vadd.f32 %v64, %v87
  %91 = vrot.lane.b32.xlu0 %v89, 64
  %v92 = vpop.permute.xlu0 %91
  %v94 = vmul.f32 %v85, %v92
  %96 = vrot.lane.b32.xlu0 %v94, 64
  %v97 = vpop.permute.xlu0 %96
  %v99 = vadd.f32 %v41, %v97
  %v100 = vtanh.pop %v99
  %v101 = vsub.f32 1.0, %v85
  %103 = vrot.lane.b32.xlu0 %v100, 96
  %v104 = vpop.permute.xlu0 %103
  %v106 = vmul.f32 %v101, %v104
  %v107 = vmul.f32 %v85, 0.0
  %v108 = vadd.f32 %v106, %v107
  %vm109 = vcmp.gt.s32.totalorder %v26, 0
  %v110 = vsel %vm109, 1, 0
  %111 = vset.pattern.permute.xlu0 0
  %112 = vperm.xlu0 %111, %v110
  %v113 = vpop.permute.xlu0 %112
  %vm114 = vcmp.eq.s32.totalorder %v113, 1
  %v115 = vsel %vm114, %v108, 0.0
  %117 = vrot.lane.b32.xlu0 %v115, 96
  %v118 = vpop.permute.xlu0 %117
  %vm120 = vcmask 254976
  %121 = vst.msk [vmem:[%s7] sm:$0x3] %vm120, %v118
  %s122 = scalar_lea.vmem %s2, 14
  %v123 = vld [vmem:[%s122] sm:$0x3]
  %124 = vmatpush.msra.mxu0 0.0
  %125 = vmatpush.msra.mxu0 0.0
  %126 = vmatpush.msra.mxu0 0.0
  %127 = vmatpush.msra.mxu0 0.0
  %128 = vmatpush.msra.mxu0 0.0
  %129 = vmatpush.msra.mxu0 0.0
  %130 = vmatpush.msra.mxu0 0.0
  %131 = vmatpush.msra.mxu0 0.0
  %132 = vmatpush.msra.mxu0 0.0
  %133 = vmatpush.msra.mxu0 0.0
  %134 = vmatpush.msra.mxu0 0.0
  %135 = vmatpush.msra.mxu0 0.0
  %136 = vmatpush.msra.mxu0 %v34
  %137 = vmatpush.msra.mxu0 %v33
  %138 = vmatpush.msra.mxu0 %v32
  %139 = vmatpush.msra.mxu0 %v31
  %140 = vmatmul.f32.gmra.mxu0 %v44
  %v141 = vpop.f32.mrf.mxu0
  %v142 = vadd.f32 0.0, %v141
  %143 = vdwg.mxu0
  %v144 = vadd.f32 %v123, %v142
  %v145 = vxor.u32 %v144, 2147483648
  %v146 = vmul.f32 %v145, 1.442695
  %v147 = vpow.pop %v146
  %v148 = vadd.f32 %v147, 1.0
  %v149 = vrcp.pop %v148
  %v150 = vmul.f32 %v148, %v149
  %v151 = vsub.f32 1.0, %v150
  %v152 = vmul.f32 %v149, %v151
  %v153 = vadd.f32 %v149, %v152
  %vm154 = vweird.f32 %v148
  %vm155 = vweird.f32 %v149
  %vm156 = vmor %vm154, %vm155
  %v157 = vsel %vm156, %v149, %v153
  %v158 = vand.u32 2147483647, %v148
  %vm159 = vcmp.eq.f32.partialorder %v158, 8.507059e+37
  %v160 = vand.u32 %v148, 2147483648
  %v161 = vor.u32 1.1754944e-38, %v160
  %v162 = vsel %vm159, %v161, %v157
  %v163 = vmul.f32 1.0, %v162
  %164 = vrot.lane.b32.xlu0 %v40, 64
  %v165 = vpop.permute.xlu0 %164
  %v167 = vadd.f32 %v142, %v165
  %169 = vrot.lane.b32.xlu0 %v167, 64
  %v170 = vpop.permute.xlu0 %169
  %v172 = vmul.f32 %v163, %v170
  %174 = vrot.lane.b32.xlu0 %v172, 64
  %v175 = vpop.permute.xlu0 %174
  %v177 = vadd.f32 %v123, %v175
  %v178 = vtanh.pop %v177
  %v179 = vsub.f32 1.0, %v163
  %181 = vrot.lane.b32.xlu0 %v178, 96
  %v182 = vpop.permute.xlu0 %181
  %v184 = vmul.f32 %v179, %v182
  %v185 = vmul.f32 %v163, 0.0
  %v186 = vadd.f32 %v184, %v185
  %vm187 = vcmp.gt.s32.totalorder %v26, 7
  %v188 = vsel %vm187, 1, 0
  %189 = vset.pattern.permute.xlu0 0
  %190 = vperm.xlu0 %189, %v188
  %v191 = vpop.permute.xlu0 %190
  %vm192 = vcmp.eq.s32.totalorder %v191, 1
  %v193 = vsel %vm192, %v186, 0.0
  %195 = vrot.lane.b32.xlu0 %v193, 96
  %v196 = vpop.permute.xlu0 %195
  %s198 = scalar_lea.vmem [#allocation2], 14
  %199 = vst.msk [vmem:[%s198] sm:$0x3] %vm120, %v196
  %s200 = scalar_lea.vmem %s1, 2
  %v201 = vld [vmem:[%s200] sm:$0x3]
  %v202 = vsel %vm42, %v118, 0
  %204 = vmatpush.msra.mxu0 0.0
  %205 = vmatpush.msra.mxu0 0.0
  %206 = vmatpush.msra.mxu0 0.0
  %207 = vmatpush.msra.mxu0 0.0
  %208 = vmatpush.msra.mxu0 0.0
  %209 = vmatpush.msra.mxu0 0.0
  %210 = vmatpush.msra.mxu0 0.0
  %211 = vmatpush.msra.mxu0 0.0
  %212 = vmatpush.msra.mxu0 0.0
  %213 = vmatpush.msra.mxu0 0.0
  %214 = vmatpush.msra.mxu0 0.0
  %215 = vmatpush.msra.mxu0 0.0
  %216 = vmatpush.msra.mxu0 %v30
  %217 = vmatpush.msra.mxu0 %v29
  %218 = vmatpush.msra.mxu0 %v28
  %219 = vmatpush.msra.mxu0 %v27
  %220 = vmatmul.f32.gmra.mxu0 %v202
  %v221 = vpop.f32.mrf.mxu0
  %v222 = vadd.f32 0.0, %v221
  %223 = vdwg.mxu0
  %v224 = vadd.f32 %v201, %v222
  %v225 = vxor.u32 %v224, 2147483648
  %v226 = vmul.f32 %v225, 1.442695
  %v227 = vpow.pop %v226
  %v228 = vadd.f32 %v227, 1.0
  %v229 = vrcp.pop %v228
  %v230 = vmul.f32 %v228, %v229
  %v231 = vsub.f32 1.0, %v230
  %v232 = vmul.f32 %v229, %v231
  %v233 = vadd.f32 %v229, %v232
  %vm234 = vweird.f32 %v228
  %vm235 = vweird.f32 %v229
  %vm236 = vmor %vm234, %vm235
  %v237 = vsel %vm236, %v229, %v233
  %v238 = vand.u32 2147483647, %v228
  %vm239 = vcmp.eq.f32.partialorder %v238, 8.507059e+37
  %v240 = vand.u32 %v228, 2147483648
  %v241 = vor.u32 1.1754944e-38, %v240
  %v242 = vsel %vm239, %v241, %v237
  %v243 = vmul.f32 1.0, %v242
  %v244 = vadd.f32 %v222, %v87
  %246 = vrot.lane.b32.xlu0 %v244, 64
  %v247 = vpop.permute.xlu0 %246
  %v249 = vmul.f32 %v243, %v247
  %251 = vrot.lane.b32.xlu0 %v249, 64
  %v252 = vpop.permute.xlu0 %251
  %v254 = vadd.f32 %v201, %v252
  %v255 = vtanh.pop %v254
  %v256 = vsub.f32 1.0, %v243
  %258 = vrot.lane.b32.xlu0 %v255, 96
  %v259 = vpop.permute.xlu0 %258
  %v261 = vmul.f32 %v256, %v259
  %v262 = vmul.f32 %v243, %v115
  %v263 = vadd.f32 %v261, %v262
  %vm264 = vcmp.gt.s32.totalorder %v26, 1
  %v265 = vsel %vm264, 1, 0
  %266 = vset.pattern.permute.xlu0 0
  %267 = vperm.xlu0 %266, %v265
  %v268 = vpop.permute.xlu0 %267
  %vm269 = vcmp.eq.s32.totalorder %v268, 1
  %v270 = vsel %vm269, %v263, %v115
  %v271 = vsel %vm269, %v263, 0.0
  %273 = vrot.lane.b32.xlu0 %v271, 96
  %v274 = vpop.permute.xlu0 %273
  %s276 = scalar_lea.vmem %s7, 2
  %277 = vst.msk [vmem:[%s276] sm:$0x3] %vm120, %v274
  %s278 = scalar_lea.vmem %s2, 12
  %v279 = vld [vmem:[%s278] sm:$0x3]
  %v280 = vsel %vm42, %v196, 0
  %282 = vmatpush.msra.mxu0 0.0
  %283 = vmatpush.msra.mxu0 0.0
  %284 = vmatpush.msra.mxu0 0.0
  %285 = vmatpush.msra.mxu0 0.0
  %286 = vmatpush.msra.mxu0 0.0
  %287 = vmatpush.msra.mxu0 0.0
  %288 = vmatpush.msra.mxu0 0.0
  %289 = vmatpush.msra.mxu0 0.0
  %290 = vmatpush.msra.mxu0 0.0
  %291 = vmatpush.msra.mxu0 0.0
  %292 = vmatpush.msra.mxu0 0.0
  %293 = vmatpush.msra.mxu0 0.0
  %294 = vmatpush.msra.mxu0 %v34
  %295 = vmatpush.msra.mxu0 %v33
  %296 = vmatpush.msra.mxu0 %v32
  %297 = vmatpush.msra.mxu0 %v31
  %298 = vmatmul.f32.gmra.mxu0 %v280
  %v299 = vpop.f32.mrf.mxu0
  %v300 = vadd.f32 0.0, %v299
  %301 = vdwg.mxu0
  %v302 = vadd.f32 %v279, %v300
  %v303 = vxor.u32 %v302, 2147483648
  %v304 = vmul.f32 %v303, 1.442695
  %v305 = vpow.pop %v304
  %v306 = vadd.f32 %v305, 1.0
  %v307 = vrcp.pop %v306
  %v308 = vmul.f32 %v306, %v307
  %v309 = vsub.f32 1.0, %v308
  %v310 = vmul.f32 %v307, %v309
  %v311 = vadd.f32 %v307, %v310
  %vm312 = vweird.f32 %v306
  %vm313 = vweird.f32 %v307
  %vm314 = vmor %vm312, %vm313
  %v315 = vsel %vm314, %v307, %v311
  %v316 = vand.u32 2147483647, %v306
  %vm317 = vcmp.eq.f32.partialorder %v316, 8.507059e+37
  %v318 = vand.u32 %v306, 2147483648
  %v319 = vor.u32 1.1754944e-38, %v318
  %v320 = vsel %vm317, %v319, %v315
  %v321 = vmul.f32 1.0, %v320
  %v322 = vadd.f32 %v300, %v165
  %324 = vrot.lane.b32.xlu0 %v322, 64
  %v325 = vpop.permute.xlu0 %324
  %v327 = vmul.f32 %v321, %v325
  %329 = vrot.lane.b32.xlu0 %v327, 64
  %v330 = vpop.permute.xlu0 %329
  %v332 = vadd.f32 %v279, %v330
  %v333 = vtanh.pop %v332
  %v334 = vsub.f32 1.0, %v321
  %336 = vrot.lane.b32.xlu0 %v333, 96
  %v337 = vpop.permute.xlu0 %336
  %v339 = vmul.f32 %v334, %v337
  %v340 = vmul.f32 %v321, %v193
  %v341 = vadd.f32 %v339, %v340
  %vm342 = vcmp.gt.s32.totalorder %v26, 6
  %v343 = vsel %vm342, 1, 0
  %344 = vset.pattern.permute.xlu0 0
  %345 = vperm.xlu0 %344, %v343
  %v346 = vpop.permute.xlu0 %345
  %vm347 = vcmp.eq.s32.totalorder %v346, 1
  %v348 = vsel %vm347, %v341, %v193
  %v349 = vsel %vm347, %v341, 0.0
  %351 = vrot.lane.b32.xlu0 %v349, 96
  %v352 = vpop.permute.xlu0 %351
  %s354 = scalar_lea.vmem [#allocation2], 12
  %355 = vst.msk [vmem:[%s354] sm:$0x3] %vm120, %v352
  %s356 = scalar_lea.vmem %s1, 4
  %v357 = vld [vmem:[%s356] sm:$0x3]
  %359 = vrot.lane.b32.xlu0 %v270, 96
  %v360 = vpop.permute.xlu0 %359
  %v361 = vsel %vm42, %v360, 0
  %363 = vmatpush.msra.mxu0 0.0
  %364 = vmatpush.msra.mxu0 0.0
  %365 = vmatpush.msra.mxu0 0.0
  %366 = vmatpush.msra.mxu0 0.0
  %367 = vmatpush.msra.mxu0 0.0
  %368 = vmatpush.msra.mxu0 0.0
  %369 = vmatpush.msra.mxu0 0.0
  %370 = vmatpush.msra.mxu0 0.0
  %371 = vmatpush.msra.mxu0 0.0
  %372 = vmatpush.msra.mxu0 0.0
  %373 = vmatpush.msra.mxu0 0.0
  %374 = vmatpush.msra.mxu0 0.0
  %375 = vmatpush.msra.mxu0 %v30
  %376 = vmatpush.msra.mxu0 %v29
  %377 = vmatpush.msra.mxu0 %v28
  %378 = vmatpush.msra.mxu0 %v27
  %379 = vmatmul.f32.gmra.mxu0 %v361
  %v380 = vpop.f32.mrf.mxu0
  %v381 = vadd.f32 0.0, %v380
  %382 = vdwg.mxu0
  %v383 = vadd.f32 %v357, %v381
  %v384 = vxor.u32 %v383, 2147483648
  %v385 = vmul.f32 %v384, 1.442695
  %v386 = vpow.pop %v385
  %v387 = vadd.f32 %v386, 1.0
  %v388 = vrcp.pop %v387
  %v389 = vmul.f32 %v387, %v388
  %v390 = vsub.f32 1.0, %v389
  %v391 = vmul.f32 %v388, %v390
  %v392 = vadd.f32 %v388, %v391
  %vm393 = vweird.f32 %v387
  %vm394 = vweird.f32 %v388
  %vm395 = vmor %vm393, %vm394
  %v396 = vsel %vm395, %v388, %v392
  %v397 = vand.u32 2147483647, %v387
  %vm398 = vcmp.eq.f32.partialorder %v397, 8.507059e+37
  %v399 = vand.u32 %v387, 2147483648
  %v400 = vor.u32 1.1754944e-38, %v399
  %v401 = vsel %vm398, %v400, %v396
  %v402 = vmul.f32 1.0, %v401
  %v403 = vadd.f32 %v381, %v87
  %405 = vrot.lane.b32.xlu0 %v403, 64
  %v406 = vpop.permute.xlu0 %405
  %v408 = vmul.f32 %v402, %v406
  %410 = vrot.lane.b32.xlu0 %v408, 64
  %v411 = vpop.permute.xlu0 %410
  %v413 = vadd.f32 %v357, %v411
  %v414 = vtanh.pop %v413
  %v415 = vsub.f32 1.0, %v402
  %417 = vrot.lane.b32.xlu0 %v414, 96
  %v418 = vpop.permute.xlu0 %417
  %v420 = vmul.f32 %v415, %v418
  %v421 = vmul.f32 %v402, %v270
  %v422 = vadd.f32 %v420, %v421
  %vm423 = vcmp.gt.s32.totalorder %v26, 2
  %v424 = vsel %vm423, 1, 0
  %425 = vset.pattern.permute.xlu0 0
  %426 = vperm.xlu0 %425, %v424
  %v427 = vpop.permute.xlu0 %426
  %vm428 = vcmp.eq.s32.totalorder %v427, 1
  %v429 = vsel %vm428, %v422, %v270
  %v430 = vsel %vm428, %v422, 0.0
  %432 = vrot.lane.b32.xlu0 %v430, 96
  %v433 = vpop.permute.xlu0 %432
  %s435 = scalar_lea.vmem %s7, 4
  %436 = vst.msk [vmem:[%s435] sm:$0x3] %vm120, %v433
  %s437 = scalar_lea.vmem %s2, 10
  %v438 = vld [vmem:[%s437] sm:$0x3]
  %440 = vrot.lane.b32.xlu0 %v348, 96
  %v441 = vpop.permute.xlu0 %440
  %v442 = vsel %vm42, %v441, 0
  %444 = vmatpush.msra.mxu0 0.0
  %445 = vmatpush.msra.mxu0 0.0
  %446 = vmatpush.msra.mxu0 0.0
  %447 = vmatpush.msra.mxu0 0.0
  %448 = vmatpush.msra.mxu0 0.0
  %449 = vmatpush.msra.mxu0 0.0
  %450 = vmatpush.msra.mxu0 0.0
  %451 = vmatpush.msra.mxu0 0.0
  %452 = vmatpush.msra.mxu0 0.0
  %453 = vmatpush.msra.mxu0 0.0
  %454 = vmatpush.msra.mxu0 0.0
  %455 = vmatpush.msra.mxu0 0.0
  %456 = vmatpush.msra.mxu0 %v34
  %457 = vmatpush.msra.mxu0 %v33
  %458 = vmatpush.msra.mxu0 %v32
  %459 = vmatpush.msra.mxu0 %v31
  %460 = vmatmul.f32.gmra.mxu0 %v442
  %v461 = vpop.f32.mrf.mxu0
  %v462 = vadd.f32 0.0, %v461
  %463 = vdwg.mxu0
  %v464 = vadd.f32 %v438, %v462
  %v465 = vxor.u32 %v464, 2147483648
  %v466 = vmul.f32 %v465, 1.442695
  %v467 = vpow.pop %v466
  %v468 = vadd.f32 %v467, 1.0
  %v469 = vrcp.pop %v468
  %v470 = vmul.f32 %v468, %v469
  %v471 = vsub.f32 1.0, %v470
  %v472 = vmul.f32 %v469, %v471
  %v473 = vadd.f32 %v469, %v472
  %vm474 = vweird.f32 %v468
  %vm475 = vweird.f32 %v469
  %vm476 = vmor %vm474, %vm475
  %v477 = vsel %vm476, %v469, %v473
  %v478 = vand.u32 2147483647, %v468
  %vm479 = vcmp.eq.f32.partialorder %v478, 8.507059e+37
  %v480 = vand.u32 %v468, 2147483648
  %v481 = vor.u32 1.1754944e-38, %v480
  %v482 = vsel %vm479, %v481, %v477
  %v483 = vmul.f32 1.0, %v482
  %v484 = vadd.f32 %v462, %v165
  %486 = vrot.lane.b32.xlu0 %v484, 64
  %v487 = vpop.permute.xlu0 %486
  %v489 = vmul.f32 %v483, %v487
  %491 = vrot.lane.b32.xlu0 %v489, 64
  %v492 = vpop.permute.xlu0 %491
  %v494 = vadd.f32 %v438, %v492
  %v495 = vtanh.pop %v494
  %v496 = vsub.f32 1.0, %v483
  %498 = vrot.lane.b32.xlu0 %v495, 96
  %v499 = vpop.permute.xlu0 %498
  %v501 = vmul.f32 %v496, %v499
  %v502 = vmul.f32 %v483, %v348
  %v503 = vadd.f32 %v501, %v502
  %vm504 = vcmp.gt.s32.totalorder %v26, 5
  %v505 = vsel %vm504, 1, 0
  %506 = vset.pattern.permute.xlu0 0
  %507 = vperm.xlu0 %506, %v505
  %v508 = vpop.permute.xlu0 %507
  %vm509 = vcmp.eq.s32.totalorder %v508, 1
  %v510 = vsel %vm509, %v503, %v348
  %v511 = vsel %vm509, %v503, 0.0
  %513 = vrot.lane.b32.xlu0 %v511, 96
  %v514 = vpop.permute.xlu0 %513
  %s516 = scalar_lea.vmem [#allocation2], 10
  %517 = vst.msk [vmem:[%s516] sm:$0x3] %vm120, %v514
  %s518 = scalar_lea.vmem %s1, 6
  %v519 = vld [vmem:[%s518] sm:$0x3]
  %521 = vrot.lane.b32.xlu0 %v429, 96
  %v522 = vpop.permute.xlu0 %521
  %v523 = vsel %vm42, %v522, 0
  %525 = vmatpush.msra.mxu0 0.0
  %526 = vmatpush.msra.mxu0 0.0
  %527 = vmatpush.msra.mxu0 0.0
  %528 = vmatpush.msra.mxu0 0.0
  %529 = vmatpush.msra.mxu0 0.0
  %530 = vmatpush.msra.mxu0 0.0
  %531 = vmatpush.msra.mxu0 0.0
  %532 = vmatpush.msra.mxu0 0.0
  %533 = vmatpush.msra.mxu0 0.0
  %534 = vmatpush.msra.mxu0 0.0
  %535 = vmatpush.msra.mxu0 0.0
  %536 = vmatpush.msra.mxu0 0.0
  %537 = vmatpush.msra.mxu0 %v30
  %538 = vmatpush.msra.mxu0 %v29
  %539 = vmatpush.msra.mxu0 %v28
  %540 = vmatpush.msra.mxu0 %v27
  %541 = vmatmul.f32.gmra.mxu0 %v523
  %v542 = vpop.f32.mrf.mxu0
  %v543 = vadd.f32 0.0, %v542
  %544 = vdwg.mxu0
  %v545 = vadd.f32 %v519, %v543
  %v546 = vxor.u32 %v545, 2147483648
  %v547 = vmul.f32 %v546, 1.442695
  %v548 = vpow.pop %v547
  %v549 = vadd.f32 %v548, 1.0
  %v550 = vrcp.pop %v549
  %v551 = vmul.f32 %v549, %v550
  %v552 = vsub.f32 1.0, %v551
  %v553 = vmul.f32 %v550, %v552
  %v554 = vadd.f32 %v550, %v553
  %vm555 = vweird.f32 %v549
  %vm556 = vweird.f32 %v550
  %vm557 = vmor %vm555, %vm556
  %v558 = vsel %vm557, %v550, %v554
  %v559 = vand.u32 2147483647, %v549
  %vm560 = vcmp.eq.f32.partialorder %v559, 8.507059e+37
  %v561 = vand.u32 %v549, 2147483648
  %v562 = vor.u32 1.1754944e-38, %v561
  %v563 = vsel %vm560, %v562, %v558
  %v564 = vmul.f32 1.0, %v563
  %v565 = vadd.f32 %v543, %v87
  %567 = vrot.lane.b32.xlu0 %v565, 64
  %v568 = vpop.permute.xlu0 %567
  %v570 = vmul.f32 %v564, %v568
  %572 = vrot.lane.b32.xlu0 %v570, 64
  %v573 = vpop.permute.xlu0 %572
  %v575 = vadd.f32 %v519, %v573
  %v576 = vtanh.pop %v575
  %v577 = vsub.f32 1.0, %v564
  %579 = vrot.lane.b32.xlu0 %v576, 96
  %v580 = vpop.permute.xlu0 %579
  %v582 = vmul.f32 %v577, %v580
  %v583 = vmul.f32 %v564, %v429
  %v584 = vadd.f32 %v582, %v583
  %vm585 = vcmp.gt.s32.totalorder %v26, 3
  %v586 = vsel %vm585, 1, 0
  %587 = vset.pattern.permute.xlu0 0
  %588 = vperm.xlu0 %587, %v586
  %v589 = vpop.permute.xlu0 %588
  %vm590 = vcmp.eq.s32.totalorder %v589, 1
  %v591 = vsel %vm590, %v584, %v429
  %v592 = vsel %vm590, %v584, 0.0
  %594 = vrot.lane.b32.xlu0 %v592, 96
  %v595 = vpop.permute.xlu0 %594
  %s597 = scalar_lea.vmem %s7, 6
  %598 = vst.msk [vmem:[%s597] sm:$0x3] %vm120, %v595
  %s599 = scalar_lea.vmem %s2, 8
  %v600 = vld [vmem:[%s599] sm:$0x3]
  %602 = vrot.lane.b32.xlu0 %v510, 96
  %v603 = vpop.permute.xlu0 %602
  %v604 = vsel %vm42, %v603, 0
  %606 = vmatpush.msra.mxu0 0.0
  %607 = vmatpush.msra.mxu0 0.0
  %608 = vmatpush.msra.mxu0 0.0
  %609 = vmatpush.msra.mxu0 0.0
  %610 = vmatpush.msra.mxu0 0.0
  %611 = vmatpush.msra.mxu0 0.0
  %612 = vmatpush.msra.mxu0 0.0
  %613 = vmatpush.msra.mxu0 0.0
  %614 = vmatpush.msra.mxu0 0.0
  %615 = vmatpush.msra.mxu0 0.0
  %616 = vmatpush.msra.mxu0 0.0
  %617 = vmatpush.msra.mxu0 0.0
  %618 = vmatpush.msra.mxu0 %v34
  %619 = vmatpush.msra.mxu0 %v33
  %620 = vmatpush.msra.mxu0 %v32
  %621 = vmatpush.msra.mxu0 %v31
  %622 = vmatmul.f32.gmra.mxu0 %v604
  %v623 = vpop.f32.mrf.mxu0
  %v624 = vadd.f32 0.0, %v623
  %625 = vdwg.mxu0
  %v626 = vadd.f32 %v600, %v624
  %v627 = vxor.u32 %v626, 2147483648
  %v628 = vmul.f32 %v627, 1.442695
  %v629 = vpow.pop %v628
  %v630 = vadd.f32 %v629, 1.0
  %v631 = vrcp.pop %v630
  %v632 = vmul.f32 %v630, %v631
  %v633 = vsub.f32 1.0, %v632
  %v634 = vmul.f32 %v631, %v633
  %v635 = vadd.f32 %v631, %v634
  %vm636 = vweird.f32 %v630
  %vm637 = vweird.f32 %v631
  %vm638 = vmor %vm636, %vm637
  %v639 = vsel %vm638, %v631, %v635
  %v640 = vand.u32 2147483647, %v630
  %vm641 = vcmp.eq.f32.partialorder %v640, 8.507059e+37
  %v642 = vand.u32 %v630, 2147483648
  %v643 = vor.u32 1.1754944e-38, %v642
  %v644 = vsel %vm641, %v643, %v639
  %v645 = vmul.f32 1.0, %v644
  %v646 = vadd.f32 %v624, %v165
  %648 = vrot.lane.b32.xlu0 %v646, 64
  %v649 = vpop.permute.xlu0 %648
  %v651 = vmul.f32 %v645, %v649
  %653 = vrot.lane.b32.xlu0 %v651, 64
  %v654 = vpop.permute.xlu0 %653
  %v656 = vadd.f32 %v600, %v654
  %v657 = vtanh.pop %v656
  %v658 = vsub.f32 1.0, %v645
  %660 = vrot.lane.b32.xlu0 %v657, 96
  %v661 = vpop.permute.xlu0 %660
  %v663 = vmul.f32 %v658, %v661
  %v664 = vmul.f32 %v645, %v510
  %v665 = vadd.f32 %v663, %v664
  %vm666 = vcmp.gt.s32.totalorder %v26, 4
  %v667 = vsel %vm666, 1, 0
  %668 = vset.pattern.permute.xlu0 0
  %669 = vperm.xlu0 %668, %v667
  %v670 = vpop.permute.xlu0 %669
  %vm671 = vcmp.eq.s32.totalorder %v670, 1
  %v672 = vsel %vm671, %v665, %v510
  %v673 = vsel %vm671, %v665, 0.0
  %675 = vrot.lane.b32.xlu0 %v673, 96
  %v676 = vpop.permute.xlu0 %675
  %s678 = scalar_lea.vmem [#allocation2], 8
  %679 = vst.msk [vmem:[%s678] sm:$0x3] %vm120, %v676
  %s680 = scalar_lea.vmem %s1, 8
  %v681 = vld [vmem:[%s680] sm:$0x3]
  %683 = vrot.lane.b32.xlu0 %v591, 96
  %v684 = vpop.permute.xlu0 %683
  %v685 = vsel %vm42, %v684, 0
  %687 = vmatpush.msra.mxu0 0.0
  %688 = vmatpush.msra.mxu0 0.0
  %689 = vmatpush.msra.mxu0 0.0
  %690 = vmatpush.msra.mxu0 0.0
  %691 = vmatpush.msra.mxu0 0.0
  %692 = vmatpush.msra.mxu0 0.0
  %693 = vmatpush.msra.mxu0 0.0
  %694 = vmatpush.msra.mxu0 0.0
  %695 = vmatpush.msra.mxu0 0.0
  %696 = vmatpush.msra.mxu0 0.0
  %697 = vmatpush.msra.mxu0 0.0
  %698 = vmatpush.msra.mxu0 0.0
  %699 = vmatpush.msra.mxu0 %v30
  %700 = vmatpush.msra.mxu0 %v29
  %701 = vmatpush.msra.mxu0 %v28
  %702 = vmatpush.msra.mxu0 %v27
  %703 = vmatmul.f32.gmra.mxu0 %v685
  %v704 = vpop.f32.mrf.mxu0
  %v705 = vadd.f32 0.0, %v704
  %706 = vdwg.mxu0
  %v707 = vadd.f32 %v681, %v705
  %v708 = vxor.u32 %v707, 2147483648
  %v709 = vmul.f32 %v708, 1.442695
  %v710 = vpow.pop %v709
  %v711 = vadd.f32 %v710, 1.0
  %v712 = vrcp.pop %v711
  %v713 = vmul.f32 %v711, %v712
  %v714 = vsub.f32 1.0, %v713
  %v715 = vmul.f32 %v712, %v714
  %v716 = vadd.f32 %v712, %v715
  %vm717 = vweird.f32 %v711
  %vm718 = vweird.f32 %v712
  %vm719 = vmor %vm717, %vm718
  %v720 = vsel %vm719, %v712, %v716
  %v721 = vand.u32 2147483647, %v711
  %vm722 = vcmp.eq.f32.partialorder %v721, 8.507059e+37
  %v723 = vand.u32 %v711, 2147483648
  %v724 = vor.u32 1.1754944e-38, %v723
  %v725 = vsel %vm722, %v724, %v720
  %v726 = vmul.f32 1.0, %v725
  %v727 = vadd.f32 %v705, %v87
  %729 = vrot.lane.b32.xlu0 %v727, 64
  %v730 = vpop.permute.xlu0 %729
  %v732 = vmul.f32 %v726, %v730
  %734 = vrot.lane.b32.xlu0 %v732, 64
  %v735 = vpop.permute.xlu0 %734
  %v737 = vadd.f32 %v681, %v735
  %v738 = vtanh.pop %v737
  %v739 = vsub.f32 1.0, %v726
  %741 = vrot.lane.b32.xlu0 %v738, 96
  %v742 = vpop.permute.xlu0 %741
  %v744 = vmul.f32 %v739, %v742
  %v745 = vmul.f32 %v726, %v591
  %v746 = vadd.f32 %v744, %v745
  %v747 = vsel %vm671, %v746, %v591
  %v748 = vsel %vm671, %v746, 0.0
  %750 = vrot.lane.b32.xlu0 %v748, 96
  %v751 = vpop.permute.xlu0 %750
  %s753 = scalar_lea.vmem %s7, 8
  %754 = vst.msk [vmem:[%s753] sm:$0x3] %vm120, %v751
  %s755 = scalar_lea.vmem %s2, 6
  %v756 = vld [vmem:[%s755] sm:$0x3]
  %758 = vrot.lane.b32.xlu0 %v672, 96
  %v759 = vpop.permute.xlu0 %758
  %v760 = vsel %vm42, %v759, 0
  %762 = vmatpush.msra.mxu0 0.0
  %763 = vmatpush.msra.mxu0 0.0
  %764 = vmatpush.msra.mxu0 0.0
  %765 = vmatpush.msra.mxu0 0.0
  %766 = vmatpush.msra.mxu0 0.0
  %767 = vmatpush.msra.mxu0 0.0
  %768 = vmatpush.msra.mxu0 0.0
  %769 = vmatpush.msra.mxu0 0.0
  %770 = vmatpush.msra.mxu0 0.0
  %771 = vmatpush.msra.mxu0 0.0
  %772 = vmatpush.msra.mxu0 0.0
  %773 = vmatpush.msra.mxu0 0.0
  %774 = vmatpush.msra.mxu0 %v34
  %775 = vmatpush.msra.mxu0 %v33
  %776 = vmatpush.msra.mxu0 %v32
  %777 = vmatpush.msra.mxu0 %v31
  %778 = vmatmul.f32.gmra.mxu0 %v760
  %v779 = vpop.f32.mrf.mxu0
  %v780 = vadd.f32 0.0, %v779
  %781 = vdwg.mxu0
  %v782 = vadd.f32 %v756, %v780
  %v783 = vxor.u32 %v782, 2147483648
  %v784 = vmul.f32 %v783, 1.442695
  %v785 = vpow.pop %v784
  %v786 = vadd.f32 %v785, 1.0
  %v787 = vrcp.pop %v786
  %v788 = vmul.f32 %v786, %v787
  %v789 = vsub.f32 1.0, %v788
  %v790 = vmul.f32 %v787, %v789
  %v791 = vadd.f32 %v787, %v790
  %vm792 = vweird.f32 %v786
  %vm793 = vweird.f32 %v787
  %vm794 = vmor %vm792, %vm793
  %v795 = vsel %vm794, %v787, %v791
  %v796 = vand.u32 2147483647, %v786
  %vm797 = vcmp.eq.f32.partialorder %v796, 8.507059e+37
  %v798 = vand.u32 %v786, 2147483648
  %v799 = vor.u32 1.1754944e-38, %v798
  %v800 = vsel %vm797, %v799, %v795
  %v801 = vmul.f32 1.0, %v800
  %v802 = vadd.f32 %v780, %v165
  %804 = vrot.lane.b32.xlu0 %v802, 64
  %v805 = vpop.permute.xlu0 %804
  %v807 = vmul.f32 %v801, %v805
  %809 = vrot.lane.b32.xlu0 %v807, 64
  %v810 = vpop.permute.xlu0 %809
  %v812 = vadd.f32 %v756, %v810
  %v813 = vtanh.pop %v812
  %v814 = vsub.f32 1.0, %v801
  %816 = vrot.lane.b32.xlu0 %v813, 96
  %v817 = vpop.permute.xlu0 %816
  %v819 = vmul.f32 %v814, %v817
  %v820 = vmul.f32 %v801, %v672
  %v821 = vadd.f32 %v819, %v820
  %v822 = vsel %vm590, %v821, %v672
  %v823 = vsel %vm590, %v821, 0.0
  %825 = vrot.lane.b32.xlu0 %v823, 96
  %v826 = vpop.permute.xlu0 %825
  %s828 = scalar_lea.vmem [#allocation2], 6
  %829 = vst.msk [vmem:[%s828] sm:$0x3] %vm120, %v826
  %s830 = scalar_lea.vmem %s1, 10
  %v831 = vld [vmem:[%s830] sm:$0x3]
  %833 = vrot.lane.b32.xlu0 %v747, 96
  %v834 = vpop.permute.xlu0 %833
  %v835 = vsel %vm42, %v834, 0
  %837 = vmatpush.msra.mxu0 0.0
  %838 = vmatpush.msra.mxu0 0.0
  %839 = vmatpush.msra.mxu0 0.0
  %840 = vmatpush.msra.mxu0 0.0
  %841 = vmatpush.msra.mxu0 0.0
  %842 = vmatpush.msra.mxu0 0.0
  %843 = vmatpush.msra.mxu0 0.0
  %844 = vmatpush.msra.mxu0 0.0
  %845 = vmatpush.msra.mxu0 0.0
  %846 = vmatpush.msra.mxu0 0.0
  %847 = vmatpush.msra.mxu0 0.0
  %848 = vmatpush.msra.mxu0 0.0
  %849 = vmatpush.msra.mxu0 %v30
  %850 = vmatpush.msra.mxu0 %v29
  %851 = vmatpush.msra.mxu0 %v28
  %852 = vmatpush.msra.mxu0 %v27
  %853 = vmatmul.f32.gmra.mxu0 %v835
  %v854 = vpop.f32.mrf.mxu0
  %v855 = vadd.f32 0.0, %v854
  %856 = vdwg.mxu0
  %v857 = vadd.f32 %v831, %v855
  %v858 = vxor.u32 %v857, 2147483648
  %v859 = vmul.f32 %v858, 1.442695
  %v860 = vpow.pop %v859
  %v861 = vadd.f32 %v860, 1.0
  %v862 = vrcp.pop %v861
  %v863 = vmul.f32 %v861, %v862
  %v864 = vsub.f32 1.0, %v863
  %v865 = vmul.f32 %v862, %v864
  %v866 = vadd.f32 %v862, %v865
  %vm867 = vweird.f32 %v861
  %vm868 = vweird.f32 %v862
  %vm869 = vmor %vm867, %vm868
  %v870 = vsel %vm869, %v862, %v866
  %v871 = vand.u32 2147483647, %v861
  %vm872 = vcmp.eq.f32.partialorder %v871, 8.507059e+37
  %v873 = vand.u32 %v861, 2147483648
  %v874 = vor.u32 1.1754944e-38, %v873
  %v875 = vsel %vm872, %v874, %v870
  %v876 = vmul.f32 1.0, %v875
  %v877 = vadd.f32 %v855, %v87
  %879 = vrot.lane.b32.xlu0 %v877, 64
  %v880 = vpop.permute.xlu0 %879
  %v882 = vmul.f32 %v876, %v880
  %884 = vrot.lane.b32.xlu0 %v882, 64
  %v885 = vpop.permute.xlu0 %884
  %v887 = vadd.f32 %v831, %v885
  %v888 = vtanh.pop %v887
  %v889 = vsub.f32 1.0, %v876
  %891 = vrot.lane.b32.xlu0 %v888, 96
  %v892 = vpop.permute.xlu0 %891
  %v894 = vmul.f32 %v889, %v892
  %v895 = vmul.f32 %v876, %v747
  %v896 = vadd.f32 %v894, %v895
  %v897 = vsel %vm509, %v896, %v747
  %v898 = vsel %vm509, %v896, 0.0
  %900 = vrot.lane.b32.xlu0 %v898, 96
  %v901 = vpop.permute.xlu0 %900
  %s903 = scalar_lea.vmem %s7, 10
  %904 = vst.msk [vmem:[%s903] sm:$0x3] %vm120, %v901
  %s905 = scalar_lea.vmem %s2, 4
  %v906 = vld [vmem:[%s905] sm:$0x3]
  %908 = vrot.lane.b32.xlu0 %v822, 96
  %v909 = vpop.permute.xlu0 %908
  %v910 = vsel %vm42, %v909, 0
  %912 = vmatpush.msra.mxu0 0.0
  %913 = vmatpush.msra.mxu0 0.0
  %914 = vmatpush.msra.mxu0 0.0
  %915 = vmatpush.msra.mxu0 0.0
  %916 = vmatpush.msra.mxu0 0.0
  %917 = vmatpush.msra.mxu0 0.0
  %918 = vmatpush.msra.mxu0 0.0
  %919 = vmatpush.msra.mxu0 0.0
  %920 = vmatpush.msra.mxu0 0.0
  %921 = vmatpush.msra.mxu0 0.0
  %922 = vmatpush.msra.mxu0 0.0
  %923 = vmatpush.msra.mxu0 0.0
  %924 = vmatpush.msra.mxu0 %v34
  %925 = vmatpush.msra.mxu0 %v33
  %926 = vmatpush.msra.mxu0 %v32
  %927 = vmatpush.msra.mxu0 %v31
  %928 = vmatmul.f32.gmra.mxu0 %v910
  %v929 = vpop.f32.mrf.mxu0
  %v930 = vadd.f32 0.0, %v929
  %931 = vdwg.mxu0
  %v932 = vadd.f32 %v906, %v930
  %v933 = vxor.u32 %v932, 2147483648
  %v934 = vmul.f32 %v933, 1.442695
  %v935 = vpow.pop %v934
  %v936 = vadd.f32 %v935, 1.0
  %v937 = vrcp.pop %v936
  %v938 = vmul.f32 %v936, %v937
  %v939 = vsub.f32 1.0, %v938
  %v940 = vmul.f32 %v937, %v939
  %v941 = vadd.f32 %v937, %v940
  %vm942 = vweird.f32 %v936
  %vm943 = vweird.f32 %v937
  %vm944 = vmor %vm942, %vm943
  %v945 = vsel %vm944, %v937, %v941
  %v946 = vand.u32 2147483647, %v936
  %vm947 = vcmp.eq.f32.partialorder %v946, 8.507059e+37
  %v948 = vand.u32 %v936, 2147483648
  %v949 = vor.u32 1.1754944e-38, %v948
  %v950 = vsel %vm947, %v949, %v945
  %v951 = vmul.f32 1.0, %v950
  %v952 = vadd.f32 %v930, %v165
  %954 = vrot.lane.b32.xlu0 %v952, 64
  %v955 = vpop.permute.xlu0 %954
  %v957 = vmul.f32 %v951, %v955
  %959 = vrot.lane.b32.xlu0 %v957, 64
  %v960 = vpop.permute.xlu0 %959
  %v962 = vadd.f32 %v906, %v960
  %v963 = vtanh.pop %v962
  %v964 = vsub.f32 1.0, %v951
  %966 = vrot.lane.b32.xlu0 %v963, 96
  %v967 = vpop.permute.xlu0 %966
  %v969 = vmul.f32 %v964, %v967
  %v970 = vmul.f32 %v951, %v822
  %v971 = vadd.f32 %v969, %v970
  %v972 = vsel %vm428, %v971, %v822
  %v973 = vsel %vm428, %v971, 0.0
  %975 = vrot.lane.b32.xlu0 %v973, 96
  %v976 = vpop.permute.xlu0 %975
  %s978 = scalar_lea.vmem [#allocation2], 4
  %979 = vst.msk [vmem:[%s978] sm:$0x3] %vm120, %v976
  %s980 = scalar_lea.vmem %s1, 12
  %v981 = vld [vmem:[%s980] sm:$0x3]
  %983 = vrot.lane.b32.xlu0 %v897, 96
  %v984 = vpop.permute.xlu0 %983
  %v985 = vsel %vm42, %v984, 0
  %987 = vmatpush.msra.mxu0 0.0
  %988 = vmatpush.msra.mxu0 0.0
  %989 = vmatpush.msra.mxu0 0.0
  %990 = vmatpush.msra.mxu0 0.0
  %991 = vmatpush.msra.mxu0 0.0
  %992 = vmatpush.msra.mxu0 0.0
  %993 = vmatpush.msra.mxu0 0.0
  %994 = vmatpush.msra.mxu0 0.0
  %995 = vmatpush.msra.mxu0 0.0
  %996 = vmatpush.msra.mxu0 0.0
  %997 = vmatpush.msra.mxu0 0.0
  %998 = vmatpush.msra.mxu0 0.0
  %999 = vmatpush.msra.mxu0 %v30
  %1000 = vmatpush.msra.mxu0 %v29
  %1001 = vmatpush.msra.mxu0 %v28
  %1002 = vmatpush.msra.mxu0 %v27
  %1003 = vmatmul.f32.gmra.mxu0 %v985
  %v1004 = vpop.f32.mrf.mxu0
  %v1005 = vadd.f32 0.0, %v1004
  %1006 = vdwg.mxu0
  %v1007 = vadd.f32 %v981, %v1005
  %v1008 = vxor.u32 %v1007, 2147483648
  %v1009 = vmul.f32 %v1008, 1.442695
  %v1010 = vpow.pop %v1009
  %v1011 = vadd.f32 %v1010, 1.0
  %v1012 = vrcp.pop %v1011
  %v1013 = vmul.f32 %v1011, %v1012
  %v1014 = vsub.f32 1.0, %v1013
  %v1015 = vmul.f32 %v1012, %v1014
  %v1016 = vadd.f32 %v1012, %v1015
  %vm1017 = vweird.f32 %v1011
  %vm1018 = vweird.f32 %v1012
  %vm1019 = vmor %vm1017, %vm1018
  %v1020 = vsel %vm1019, %v1012, %v1016
  %v1021 = vand.u32 2147483647, %v1011
  %vm1022 = vcmp.eq.f32.partialorder %v1021, 8.507059e+37
  %v1023 = vand.u32 %v1011, 2147483648
  %v1024 = vor.u32 1.1754944e-38, %v1023
  %v1025 = vsel %vm1022, %v1024, %v1020
  %v1026 = vmul.f32 1.0, %v1025
  %v1027 = vadd.f32 %v1005, %v87
  %1029 = vrot.lane.b32.xlu0 %v1027, 64
  %v1030 = vpop.permute.xlu0 %1029
  %v1032 = vmul.f32 %v1026, %v1030
  %1034 = vrot.lane.b32.xlu0 %v1032, 64
  %v1035 = vpop.permute.xlu0 %1034
  %v1037 = vadd.f32 %v981, %v1035
  %v1038 = vtanh.pop %v1037
  %v1039 = vsub.f32 1.0, %v1026
  %1041 = vrot.lane.b32.xlu0 %v1038, 96
  %v1042 = vpop.permute.xlu0 %1041
  %v1044 = vmul.f32 %v1039, %v1042
  %v1045 = vmul.f32 %v1026, %v897
  %v1046 = vadd.f32 %v1044, %v1045
  %v1047 = vsel %vm347, %v1046, %v897
  %v1048 = vsel %vm347, %v1046, 0.0
  %1050 = vrot.lane.b32.xlu0 %v1048, 96
  %v1051 = vpop.permute.xlu0 %1050
  %s1053 = scalar_lea.vmem %s7, 12
  %1054 = vst.msk [vmem:[%s1053] sm:$0x3] %vm120, %v1051
  %s1055 = scalar_lea.vmem %s2, 2
  %v1056 = vld [vmem:[%s1055] sm:$0x3]
  %1058 = vrot.lane.b32.xlu0 %v972, 96
  %v1059 = vpop.permute.xlu0 %1058
  %v1060 = vsel %vm42, %v1059, 0
  %1062 = vmatpush.msra.mxu0 0.0
  %1063 = vmatpush.msra.mxu0 0.0
  %1064 = vmatpush.msra.mxu0 0.0
  %1065 = vmatpush.msra.mxu0 0.0
  %1066 = vmatpush.msra.mxu0 0.0
  %1067 = vmatpush.msra.mxu0 0.0
  %1068 = vmatpush.msra.mxu0 0.0
  %1069 = vmatpush.msra.mxu0 0.0
  %1070 = vmatpush.msra.mxu0 0.0
  %1071 = vmatpush.msra.mxu0 0.0
  %1072 = vmatpush.msra.mxu0 0.0
  %1073 = vmatpush.msra.mxu0 0.0
  %1074 = vmatpush.msra.mxu0 %v34
  %1075 = vmatpush.msra.mxu0 %v33
  %1076 = vmatpush.msra.mxu0 %v32
  %1077 = vmatpush.msra.mxu0 %v31
  %1078 = vmatmul.f32.gmra.mxu0 %v1060
  %v1079 = vpop.f32.mrf.mxu0
  %v1080 = vadd.f32 0.0, %v1079
  %1081 = vdwg.mxu0
  %v1082 = vadd.f32 %v1056, %v1080
  %v1083 = vxor.u32 %v1082, 2147483648
  %v1084 = vmul.f32 %v1083, 1.442695
  %v1085 = vpow.pop %v1084
  %v1086 = vadd.f32 %v1085, 1.0
  %v1087 = vrcp.pop %v1086
  %v1088 = vmul.f32 %v1086, %v1087
  %v1089 = vsub.f32 1.0, %v1088
  %v1090 = vmul.f32 %v1087, %v1089
  %v1091 = vadd.f32 %v1087, %v1090
  %vm1092 = vweird.f32 %v1086
  %vm1093 = vweird.f32 %v1087
  %vm1094 = vmor %vm1092, %vm1093
  %v1095 = vsel %vm1094, %v1087, %v1091
  %v1096 = vand.u32 2147483647, %v1086
  %vm1097 = vcmp.eq.f32.partialorder %v1096, 8.507059e+37
  %v1098 = vand.u32 %v1086, 2147483648
  %v1099 = vor.u32 1.1754944e-38, %v1098
  %v1100 = vsel %vm1097, %v1099, %v1095
  %v1101 = vmul.f32 1.0, %v1100
  %v1102 = vadd.f32 %v1080, %v165
  %1104 = vrot.lane.b32.xlu0 %v1102, 64
  %v1105 = vpop.permute.xlu0 %1104
  %v1107 = vmul.f32 %v1101, %v1105
  %1109 = vrot.lane.b32.xlu0 %v1107, 64
  %v1110 = vpop.permute.xlu0 %1109
  %v1112 = vadd.f32 %v1056, %v1110
  %v1113 = vtanh.pop %v1112
  %v1114 = vsub.f32 1.0, %v1101
  %1116 = vrot.lane.b32.xlu0 %v1113, 96
  %v1117 = vpop.permute.xlu0 %1116
  %v1119 = vmul.f32 %v1114, %v1117
  %v1120 = vmul.f32 %v1101, %v972
  %v1121 = vadd.f32 %v1119, %v1120
  %v1122 = vsel %vm269, %v1121, %v972
  %v1123 = vsel %vm269, %v1121, 0.0
  %1125 = vrot.lane.b32.xlu0 %v1123, 96
  %v1126 = vpop.permute.xlu0 %1125
  %s1128 = scalar_lea.vmem [#allocation2], 2
  %1129 = vst.msk [vmem:[%s1128] sm:$0x3] %vm120, %v1126
  %s1130 = scalar_lea.vmem %s1, 14
  %v1131 = vld [vmem:[%s1130] sm:$0x3]
  %1133 = vrot.lane.b32.xlu0 %v1047, 96
  %v1134 = vpop.permute.xlu0 %1133
  %v1135 = vsel %vm42, %v1134, 0
  %1137 = vmatpush.msra.mxu0 0.0
  %1138 = vmatpush.msra.mxu0 0.0
  %1139 = vmatpush.msra.mxu0 0.0
  %1140 = vmatpush.msra.mxu0 0.0
  %1141 = vmatpush.msra.mxu0 0.0
  %1142 = vmatpush.msra.mxu0 0.0
  %1143 = vmatpush.msra.mxu0 0.0
  %1144 = vmatpush.msra.mxu0 0.0
  %1145 = vmatpush.msra.mxu0 0.0
  %1146 = vmatpush.msra.mxu0 0.0
  %1147 = vmatpush.msra.mxu0 0.0
  %1148 = vmatpush.msra.mxu0 0.0
  %1149 = vmatpush.msra.mxu0 %v30
  %1150 = vmatpush.msra.mxu0 %v29
  %1151 = vmatpush.msra.mxu0 %v28
  %1152 = vmatpush.msra.mxu0 %v27
  %1153 = vmatmul.f32.gmra.mxu0 %v1135
  %v1154 = vpop.f32.mrf.mxu0
  %v1155 = vadd.f32 0.0, %v1154
  %1156 = vdwg.mxu0
  %v1157 = vadd.f32 %v1131, %v1155
  %v1158 = vxor.u32 %v1157, 2147483648
  %v1159 = vmul.f32 %v1158, 1.442695
  %v1160 = vpow.pop %v1159
  %v1161 = vadd.f32 %v1160, 1.0
  %v1162 = vrcp.pop %v1161
  %v1163 = vmul.f32 %v1161, %v1162
  %v1164 = vsub.f32 1.0, %v1163
  %v1165 = vmul.f32 %v1162, %v1164
  %v1166 = vadd.f32 %v1162, %v1165
  %vm1167 = vweird.f32 %v1161
  %vm1168 = vweird.f32 %v1162
  %vm1169 = vmor %vm1167, %vm1168
  %v1170 = vsel %vm1169, %v1162, %v1166
  %v1171 = vand.u32 2147483647, %v1161
  %vm1172 = vcmp.eq.f32.partialorder %v1171, 8.507059e+37
  %v1173 = vand.u32 %v1161, 2147483648
  %v1174 = vor.u32 1.1754944e-38, %v1173
  %v1175 = vsel %vm1172, %v1174, %v1170
  %v1176 = vmul.f32 1.0, %v1175
  %v1177 = vadd.f32 %v1155, %v87
  %1179 = vrot.lane.b32.xlu0 %v1177, 64
  %v1180 = vpop.permute.xlu0 %1179
  %v1182 = vmul.f32 %v1176, %v1180
  %1184 = vrot.lane.b32.xlu0 %v1182, 64
  %v1185 = vpop.permute.xlu0 %1184
  %v1187 = vadd.f32 %v1131, %v1185
  %v1188 = vtanh.pop %v1187
  %v1189 = vsub.f32 1.0, %v1176
  %1191 = vrot.lane.b32.xlu0 %v1188, 96
  %v1192 = vpop.permute.xlu0 %1191
  %v1194 = vmul.f32 %v1189, %v1192
  %v1195 = vmul.f32 %v1176, %v1047
  %v1196 = vadd.f32 %v1194, %v1195
  %v1197 = vsel %vm192, %v1196, 0.0
  %1199 = vrot.lane.b32.xlu0 %v1197, 96
  %v1200 = vpop.permute.xlu0 %1199
  %s1202 = scalar_lea.vmem %s7, 14
  %1203 = vst.msk [vmem:[%s1202] sm:$0x3] %vm120, %v1200
  %v1204 = vld [vmem:[%s2] sm:$0x3]
  %1206 = vrot.lane.b32.xlu0 %v1122, 96
  %v1207 = vpop.permute.xlu0 %1206
  %v1208 = vsel %vm42, %v1207, 0
  %1210 = vmatpush.msra.mxu0 0.0
  %1211 = vmatpush.msra.mxu0 0.0
  %1212 = vmatpush.msra.mxu0 0.0
  %1213 = vmatpush.msra.mxu0 0.0
  %1214 = vmatpush.msra.mxu0 0.0
  %1215 = vmatpush.msra.mxu0 0.0
  %1216 = vmatpush.msra.mxu0 0.0
  %1217 = vmatpush.msra.mxu0 0.0
  %1218 = vmatpush.msra.mxu0 0.0
  %1219 = vmatpush.msra.mxu0 0.0
  %1220 = vmatpush.msra.mxu0 0.0
  %1221 = vmatpush.msra.mxu0 0.0
  %1222 = vmatpush.msra.mxu0 %v34
  %1223 = vmatpush.msra.mxu0 %v33
  %1224 = vmatpush.msra.mxu0 %v32
  %1225 = vmatpush.msra.mxu0 %v31
  %1226 = vmatmul.f32.gmra.mxu0 %v1208
  %v1227 = vpop.f32.mrf.mxu0
  %v1228 = vadd.f32 0.0, %v1227
  %1229 = vdwg.mxu0
  %v1230 = vadd.f32 %v1204, %v1228
  %v1231 = vxor.u32 %v1230, 2147483648
  %v1232 = vmul.f32 %v1231, 1.442695
  %v1233 = vpow.pop %v1232
  %v1234 = vadd.f32 %v1233, 1.0
  %v1235 = vrcp.pop %v1234
  %v1236 = vmul.f32 %v1234, %v1235
  %v1237 = vsub.f32 1.0, %v1236
  %v1238 = vmul.f32 %v1235, %v1237
  %v1239 = vadd.f32 %v1235, %v1238
  %vm1240 = vweird.f32 %v1234
  %vm1241 = vweird.f32 %v1235
  %vm1242 = vmor %vm1240, %vm1241
  %v1243 = vsel %vm1242, %v1235, %v1239
  %v1244 = vand.u32 2147483647, %v1234
  %vm1245 = vcmp.eq.f32.partialorder %v1244, 8.507059e+37
  %v1246 = vand.u32 %v1234, 2147483648
  %v1247 = vor.u32 1.1754944e-38, %v1246
  %v1248 = vsel %vm1245, %v1247, %v1243
  %v1249 = vmul.f32 1.0, %v1248
  %v1250 = vadd.f32 %v1228, %v165
  %1252 = vrot.lane.b32.xlu0 %v1250, 64
  %v1253 = vpop.permute.xlu0 %1252
  %v1255 = vmul.f32 %v1249, %v1253
  %1257 = vrot.lane.b32.xlu0 %v1255, 64
  %v1258 = vpop.permute.xlu0 %1257
  %v1260 = vadd.f32 %v1204, %v1258
  %v1261 = vtanh.pop %v1260
  %v1262 = vsub.f32 1.0, %v1249
  %1264 = vrot.lane.b32.xlu0 %v1261, 96
  %v1265 = vpop.permute.xlu0 %1264
  %v1267 = vmul.f32 %v1262, %v1265
  %v1268 = vmul.f32 %v1249, %v1122
  %v1269 = vadd.f32 %v1267, %v1268
  %v1270 = vsel %vm114, %v1269, 0.0
  %1272 = vrot.lane.b32.xlu0 %v1270, 96
  %v1273 = vpop.permute.xlu0 %1272
  %1275 = vst.msk [vmem:[#allocation2] sm:$0x3] %vm120, %v1273
  %v1276 = vld [vmem:[%s7] sm:$0x3]
  %v1277 = vld [vmem:[%s7 + $0x2] sm:$0x3]
  %v1278 = vld [vmem:[%s7 + $0x4] sm:$0x3]
  %v1279 = vld [vmem:[%s7 + $0x6] sm:$0x3]
  %v1280 = vld [vmem:[%s7 + $0x8] sm:$0x3]
  %v1281 = vld [vmem:[%s7 + $0xa] sm:$0x3]
  %v1282 = vld [vmem:[%s7 + $0xc] sm:$0x3]
  %v1283 = vld [vmem:[%s7 + $0xe] sm:$0x3]
  %v1284 = vld [vmem:[#allocation2] sm:$0x3]
  %v1285 = vld [vmem:[#allocation2 + $0x2] sm:$0x3]
  %v1286 = vld [vmem:[#allocation2 + $0x4] sm:$0x3]
  %v1287 = vld [vmem:[#allocation2 + $0x6] sm:$0x3]
  %v1288 = vld [vmem:[#allocation2 + $0x8] sm:$0x3]
  %v1289 = vld [vmem:[#allocation2 + $0xa] sm:$0x3]
  %v1290 = vld [vmem:[#allocation2 + $0xc] sm:$0x3]
  %v1291 = vld [vmem:[#allocation2 + $0xe] sm:$0x3]
  %v1292 = vadd.f32 %v1276, %v1284
  %v1293 = vadd.f32 %v1277, %v1285
  %v1294 = vadd.f32 %v1278, %v1286
  %v1295 = vadd.f32 %v1279, %v1287
  %v1296 = vadd.f32 %v1280, %v1288
  %v1297 = vadd.f32 %v1281, %v1289
  %v1298 = vadd.f32 %v1282, %v1290
  %v1299 = vadd.f32 %v1283, %v1291
  %v1300 = vmul.f32 %v1292, 0.5
  %v1301 = vmul.f32 %v1293, 0.5
  %v1302 = vmul.f32 %v1294, 0.5
  %v1303 = vmul.f32 %v1295, 0.5
  %v1304 = vmul.f32 %v1296, 0.5
  %v1305 = vmul.f32 %v1297, 0.5
  %v1306 = vmul.f32 %v1298, 0.5
  %v1307 = vmul.f32 %v1299, 0.5
  %v1308 = vmul.f32 %v1300, %v1300
  %v1309 = vmul.f32 %v1301, %v1301
  %v1310 = vmul.f32 %v1302, %v1302
  %v1311 = vmul.f32 %v1303, %v1303
  %v1312 = vmul.f32 %v1304, %v1304
  %v1313 = vmul.f32 %v1305, %v1305
  %v1314 = vmul.f32 %v1306, %v1306
  %v1315 = vmul.f32 %v1307, %v1307
  %v1316 = vsel %vm120, %v1308, 0.0
  %1317 = vadd.xlane.f32.xlu0 %v1316
  %v1318 = vpop.xlane.xlu0 %1317
  %v1319 = vsel %vm120, %v1309, 0.0
  %1320 = vadd.xlane.f32.xlu0 %v1319
  %v1321 = vpop.xlane.xlu0 %1320
  %v1322 = vsel %vm120, %v1310, 0.0
  %1323 = vadd.xlane.f32.xlu0 %v1322
  %v1324 = vpop.xlane.xlu0 %1323
  %v1325 = vsel %vm120, %v1311, 0.0
  %1326 = vadd.xlane.f32.xlu0 %v1325
  %v1327 = vpop.xlane.xlu0 %1326
  %v1328 = vsel %vm120, %v1312, 0.0
  %1329 = vadd.xlane.f32.xlu0 %v1328
  %v1330 = vpop.xlane.xlu0 %1329
  %v1331 = vsel %vm120, %v1313, 0.0
  %1332 = vadd.xlane.f32.xlu0 %v1331
  %v1333 = vpop.xlane.xlu0 %1332
  %v1334 = vsel %vm120, %v1314, 0.0
  %1335 = vadd.xlane.f32.xlu0 %v1334
  %v1336 = vpop.xlane.xlu0 %1335
  %v1337 = vsel %vm120, %v1315, 0.0
  %1338 = vadd.xlane.f32.xlu0 %v1337
  %v1339 = vpop.xlane.xlu0 %1338
  %v1340 = vadd.f32 %v1318, 1e-16
  %v1341 = vadd.f32 %v1321, 1e-16
  %v1342 = vadd.f32 %v1324, 1e-16
  %v1343 = vadd.f32 %v1327, 1e-16
  %v1344 = vadd.f32 %v1330, 1e-16
  %v1345 = vadd.f32 %v1333, 1e-16
  %v1346 = vadd.f32 %v1336, 1e-16
  %v1347 = vadd.f32 %v1339, 1e-16
  %v1348 = vrsqrt.pop %v1340
  %v1349 = vmul.f32 %v1348, %v1340
  %v1350 = vmul.f32 %v1349, %v1348
  %v1351 = vmul.f32 0.5, %v1350
  %v1352 = vsub.f32 1.5, %v1351
  %v1353 = vmul.f32 %v1348, %v1352
  %vm1354 = vweird.f32 %v1340
  %vm1355 = vweird.f32 %v1348
  %vm1356 = vmor %vm1354, %vm1355
  %v1357 = vsel %vm1356, %v1348, %v1353
  %v1358 = vrsqrt.pop %v1341
  %v1359 = vmul.f32 %v1358, %v1341
  %v1360 = vmul.f32 %v1359, %v1358
  %v1361 = vmul.f32 0.5, %v1360
  %v1362 = vsub.f32 1.5, %v1361
  %v1363 = vmul.f32 %v1358, %v1362
  %vm1364 = vweird.f32 %v1341
  %vm1365 = vweird.f32 %v1358
  %vm1366 = vmor %vm1364, %vm1365
  %v1367 = vsel %vm1366, %v1358, %v1363
  %v1368 = vrsqrt.pop %v1342
  %v1369 = vmul.f32 %v1368, %v1342
  %v1370 = vmul.f32 %v1369, %v1368
  %v1371 = vmul.f32 0.5, %v1370
  %v1372 = vsub.f32 1.5, %v1371
  %v1373 = vmul.f32 %v1368, %v1372
  %vm1374 = vweird.f32 %v1342
  %vm1375 = vweird.f32 %v1368
  %vm1376 = vmor %vm1374, %vm1375
  %v1377 = vsel %vm1376, %v1368, %v1373
  %v1378 = vrsqrt.pop %v1343
  %v1379 = vmul.f32 %v1378, %v1343
  %v1380 = vmul.f32 %v1379, %v1378
  %v1381 = vmul.f32 0.5, %v1380
  %v1382 = vsub.f32 1.5, %v1381
  %v1383 = vmul.f32 %v1378, %v1382
  %vm1384 = vweird.f32 %v1343
  %vm1385 = vweird.f32 %v1378
  %vm1386 = vmor %vm1384, %vm1385
  %v1387 = vsel %vm1386, %v1378, %v1383
  %v1388 = vrsqrt.pop %v1344
  %v1389 = vmul.f32 %v1388, %v1344
  %v1390 = vmul.f32 %v1389, %v1388
  %v1391 = vmul.f32 0.5, %v1390
  %v1392 = vsub.f32 1.5, %v1391
  %v1393 = vmul.f32 %v1388, %v1392
  %vm1394 = vweird.f32 %v1344
  %vm1395 = vweird.f32 %v1388
  %vm1396 = vmor %vm1394, %vm1395
  %v1397 = vsel %vm1396, %v1388, %v1393
  %v1398 = vrsqrt.pop %v1345
  %v1399 = vmul.f32 %v1398, %v1345
  %v1400 = vmul.f32 %v1399, %v1398
  %v1401 = vmul.f32 0.5, %v1400
  %v1402 = vsub.f32 1.5, %v1401
  %v1403 = vmul.f32 %v1398, %v1402
  %vm1404 = vweird.f32 %v1345
  %vm1405 = vweird.f32 %v1398
  %vm1406 = vmor %vm1404, %vm1405
  %v1407 = vsel %vm1406, %v1398, %v1403
  %v1408 = vrsqrt.pop %v1346
  %v1409 = vmul.f32 %v1408, %v1346
  %v1410 = vmul.f32 %v1409, %v1408
  %v1411 = vmul.f32 0.5, %v1410
  %v1412 = vsub.f32 1.5, %v1411
  %v1413 = vmul.f32 %v1408, %v1412
  %vm1414 = vweird.f32 %v1346
  %vm1415 = vweird.f32 %v1408
  %vm1416 = vmor %vm1414, %vm1415
  %v1417 = vsel %vm1416, %v1408, %v1413
  %v1418 = vrsqrt.pop %v1347
  %v1419 = vmul.f32 %v1418, %v1347
  %v1420 = vmul.f32 %v1419, %v1418
  %v1421 = vmul.f32 0.5, %v1420
  %v1422 = vsub.f32 1.5, %v1421
  %v1423 = vmul.f32 %v1418, %v1422
  %vm1424 = vweird.f32 %v1347
  %vm1425 = vweird.f32 %v1418
  %vm1426 = vmor %vm1424, %vm1425
  %v1427 = vsel %vm1426, %v1418, %v1423
  %v1428 = vmul.f32 %v1300, %v1357
  %v1429 = vmul.f32 %v1301, %v1367
  %v1430 = vmul.f32 %v1302, %v1377
  %v1431 = vmul.f32 %v1303, %v1387
  %v1432 = vmul.f32 %v1304, %v1397
  %v1433 = vmul.f32 %v1305, %v1407
  %v1434 = vmul.f32 %v1306, %v1417
  %v1435 = vmul.f32 %v1307, %v1427
  %1436 = vst.msk [vmem:[%s7] sm:$0x3] %vm120, %v1428
  %1437 = vst.msk [vmem:[%s7 + $0x2] sm:$0x3] %vm120, %v1429
  %1438 = vst.msk [vmem:[%s7 + $0x4] sm:$0x3] %vm120, %v1430
  %1439 = vst.msk [vmem:[%s7 + $0x6] sm:$0x3] %vm120, %v1431
  %1440 = vst.msk [vmem:[%s7 + $0x8] sm:$0x3] %vm120, %v1432
  %1441 = vst.msk [vmem:[%s7 + $0xa] sm:$0x3] %vm120, %v1433
  %1442 = vst.msk [vmem:[%s7 + $0xc] sm:$0x3] %vm120, %v1434
  %1443 = vst.msk [vmem:[%s7 + $0xe] sm:$0x3] %vm120, %v1435
  // Predicated region
  $region30: #{glove_rnn_encoder_forward.1} parent=0 // pred_check
    _
  $region31: #{glove_rnn_encoder_forward.1} parent=0 // pred_check_branch
    %1445 = sbr.rel (0) target = $region33
  $region32: #{glove_rnn_encoder_forward.1} parent=0 // pred_region
    _
  $region33: #{glove_rnn_encoder_forward.1} parent=0 // pred_fallthru
    _
  // Predicated region
  $region34: #{glove_rnn_encoder_forward.1} parent=0 // pred_check
    _
  $region35: #{glove_rnn_encoder_forward.1} parent=0 // pred_check_branch
    %1447 = sbr.rel (0) target = $region37
  $region36: #{glove_rnn_encoder_forward.1} parent=0 // pred_region
    _
  $region37: #{glove_rnn_encoder_forward.1} parent=0 // pred_fallthru
    _

</llo_original>
